<compile_context>
chip_gen: v7x
topology: tpu7x:2x2x1
jax: 0.10.0
libtpu: 0.0.40
codegen_flags: <defaults>
</compile_context>

<pallas_src>
import math
import functools

import numpy as np
import jax
import jax.numpy as jnp
from jax.experimental import pallas as pl
from jax.experimental.pallas import tpu as pltpu

LANE = 128


# ----------------------------------------------------------------------------
# Positional embedding (constant precompute -> plain numpy/JAX glue)
# ----------------------------------------------------------------------------
def get_2d_sincos_pos_embed(embed_dim, height, width):
    gy, gx = np.meshgrid(np.arange(height, dtype=np.float32),
                         np.arange(width, dtype=np.float32), indexing="ij")
    grid = np.stack([gy, gx], axis=-1).reshape(-1, 2)            # (L, 2)
    assert embed_dim % 2 == 0
    dim_half = embed_dim // 2
    pos = np.zeros((grid.shape[0], embed_dim), dtype=np.float32)
    div_term = np.exp(np.arange(0, dim_half, 2, dtype=np.float32)
                      * -(math.log(10000.0) / dim_half))
    pos[:, 0:dim_half:2] = np.sin(grid[:, 0:1] * div_term)
    pos[:, 1:dim_half:2] = np.cos(grid[:, 0:1] * div_term)
    pos[:, dim_half::2] = np.sin(grid[:, 1:2] * div_term)
    pos[:, dim_half + 1::2] = np.cos(grid[:, 1:2] * div_term)
    return jnp.asarray(pos)                                       # (L, C)


# ----------------------------------------------------------------------------
# Fused kernel.  grid = (batch, layer); the (L, Cp) activation slab for one
# batch element lives in the output VMEM block across layer steps.
# ----------------------------------------------------------------------------
def fused_layers_kernel(x_ref,
                        ln1_w_ref, ln1_b_ref,
                        wv_ref, wo_ref, bo_ref,
                        ln2_w_ref, ln2_b_ref,
                        w1_ref, b1_ref, w2_ref, b2_ref,
                        o_ref, *, true_c, inv_len):
    layer = pl.program_id(1)
    eps = 1e-5                                     # nn.LayerNorm default

    # Layer 0: initialize the resident slab (x already has pos_embed added).
    @pl.when(layer == 0)
    def _():
        o_ref[...] = x_ref[...]

    x = o_ref[...]                                 # (L, Cp) f32 resident slab

    # Lane mask so LayerNorm statistics cover only the true C channels.
    lane = jax.lax.broadcasted_iota(jnp.int32, x.shape, 1)
    lane_mask = (lane < true_c).astype(jnp.float32)
    inv_c = 1.0 / true_c

    def layer_norm(v, w, b):
        mu = jnp.sum(v, axis=-1, keepdims=True) * inv_c     # padded lanes are 0
        cen = (v - mu) * lane_mask
        var = jnp.sum(cen * cen, axis=-1, keepdims=True) * inv_c
        # w, b are zero on padded lanes -> output padded lanes stay exactly 0.
        return cen * jax.lax.rsqrt(var + eps) * w + b

    # ---- EfficientAttention -------------------------------------------------
    # softmax over a single global key == 1; q_proj / k_proj / scale are inert.
    # Output = out_proj(mean_over_tokens(v)) broadcast to every token.
    x2 = layer_norm(x, ln1_w_ref[...], ln1_b_ref[...])
    v = jnp.dot(x2.astype(jnp.bfloat16), wv_ref[...],
                preferred_element_type=jnp.float32)            # (L, Cp)
    pooled = jnp.sum(v, axis=0, keepdims=True) * inv_len       # (1, Cp) XLU reduce
    attn_row = jnp.dot(pooled.astype(jnp.bfloat16), wo_ref[...],
                       preferred_element_type=jnp.float32) + bo_ref[...]   # (1, Cp)
    x = x + attn_row                                           # broadcast over L

    # ---- MLP (Linear -> ReLU -> Linear; Dropout(p=0) is identity) -----------
    x2 = layer_norm(x, ln2_w_ref[...], ln2_b_ref[...])
    h1 = jnp.maximum(
        jnp.dot(x2.astype(jnp.bfloat16), w1_ref[...],
                preferred_element_type=jnp.float32) + b1_ref[...], 0.0)    # (L, Hp)
    mlp = jnp.dot(h1.astype(jnp.bfloat16), w2_ref[...],
                  preferred_element_type=jnp.float32) + b2_ref[...]        # (L, Cp)
    o_ref[...] = x + mlp


# ----------------------------------------------------------------------------
# Module wrapper (layout glue + single fused pallas_call)
# ----------------------------------------------------------------------------
def _pad2(a, rows, cols):
    return jnp.pad(a, ((0, rows - a.shape[0]), (0, cols - a.shape[1])))


def transformer_module(x_nchw, layer_params, num_heads):
    N, C, H, W = x_nchw.shape
    assert C % num_heads == 0            # heads only split C; output unaffected
    L = H * W
    assert L % 8 == 0, "tokens per image must be a multiple of 8 (sublane tile)"
    num_layers = len(layer_params)
    hidden = layer_params[0]["w1"].shape[1]

    Cp = ((C + LANE - 1) // LANE) * LANE
    Hp = ((hidden + LANE - 1) // LANE) * LANE
    NL = N * L

    # NCHW -> (N, L, C); add pos embed once here; zero-pad channels to Cp.
    x = x_nchw.reshape(N, C, L).transpose(0, 2, 1)             # (N, L, C)
    x = x + get_2d_sincos_pos_embed(C, H, W)[None]             # (N, L, C)
    x = jnp.pad(x, ((0, 0), (0, 0), (0, Cp - C)))
    x = x.reshape(NL, Cp).astype(jnp.float32)                  # (NL, Cp)

    f32, bf16 = jnp.float32, jnp.bfloat16

    def stack(key, rows, cols, dtype):
        return jnp.stack([_pad2(p[key], rows, cols)
                          for p in layer_params]).astype(dtype)

    # Per-layer weights stacked on a leading layer dim; MXU weights in bf16.
    # wq / wk are mathematically inert (length-1 softmax) and are not passed.
    ln1_w = stack("ln1_w", 1, Cp, f32); ln1_b = stack("ln1_b", 1, Cp, f32)
    wv = stack("wv", Cp, Cp, bf16)
    wo = stack("wo", Cp, Cp, bf16);     bo = stack("bo", 1, Cp, f32)
    ln2_w = stack("ln2_w", 1, Cp, f32); ln2_b = stack("ln2_b", 1, Cp, f32)
    w1 = stack("w1", Cp, Hp, bf16);     b1 = stack("b1", 1, Hp, f32)
    w2 = stack("w2", Hp, Cp, bf16);     b2 = stack("b2", 1, Cp, f32)

    def per_batch():
        return pl.BlockSpec((L, Cp), lambda b, l: (b, 0))

    def per_layer(shape):                           # shape excludes layer dim
        nd = len(shape)
        return pl.BlockSpec((None,) + shape,
                            lambda b, l, _nd=nd: (l,) + (0,) * _nd)

    kernel = functools.partial(fused_layers_kernel, true_c=C, inv_len=1.0 / L)
    y = pl.pallas_call(
        kernel,
        out_shape=jax.ShapeDtypeStruct((NL, Cp), jnp.float32),
        grid=(N, num_layers),
        in_specs=[
            per_batch(),                             # x (+pos), layer-0 init only
            per_layer((1, Cp)), per_layer((1, Cp)),  # ln1 w, b
            per_layer((Cp, Cp)),                     # Wv
            per_layer((Cp, Cp)), per_layer((1, Cp)), # Wo, bo
            per_layer((1, Cp)), per_layer((1, Cp)),  # ln2 w, b
            per_layer((Cp, Hp)), per_layer((1, Hp)), # W1, b1
            per_layer((Hp, Cp)), per_layer((1, Cp)), # W2, b2
        ],
        out_specs=per_batch(),                       # resident across layer axis
        compiler_params=pltpu.CompilerParams(
            dimension_semantics=("parallel", "arbitrary"),
            vmem_limit_bytes=32 * 1024 * 1024),
    )(x, ln1_w, ln1_b, wv, wo, bo, ln2_w, ln2_b, w1, b1, w2, b2)

    y = y[:, :C].reshape(N, L, C).transpose(0, 2, 1).reshape(N, C, H, W)
    return y


# ----------------------------------------------------------------------------
# Parameter init (mirrors the PyTorch module's parameter set; wq/wk kept only
# for reference fidelity -- they cannot influence the forward output).
# ----------------------------------------------------------------------------
def init_params(key, C, num_layers, mlp_ratio=4.0):
    hidden = int(C * mlp_ratio)
    layers = []
    for i in range(num_layers):
        ks = jax.random.split(jax.random.fold_in(key, i), 8)

        def lin(k, fi, fo):
            return jax.random.normal(k, (fi, fo), jnp.float32) * 0.02

        layers.append(dict(
            ln1_w=jnp.ones((1, C), jnp.float32),
            ln1_b=jnp.zeros((1, C), jnp.float32),
            wq=lin(ks[0], C, C), wk=lin(ks[1], C, C),   # inert (see note above)
            wv=lin(ks[2], C, C),
            wo=lin(ks[3], C, C),
            bo=jax.random.normal(ks[4], (1, C), jnp.float32) * 0.02,
            ln2_w=jnp.ones((1, C), jnp.float32),
            ln2_b=jnp.zeros((1, C), jnp.float32),
            w1=lin(ks[5], C, hidden),
            b1=jax.random.normal(ks[6], (1, hidden), jnp.float32) * 0.02,
            w2=lin(ks[7], hidden, C),
            b2=jnp.zeros((1, C), jnp.float32),
        ))
    return layers


# ----------------------------------------------------------------------------
# Pure-JAX f32 reference that follows the PyTorch flow literally (heads, q, k,
# softmax and all) -- used to verify the optimized kernel is equivalent.
# ----------------------------------------------------------------------------
def reference_forward(x_nchw, layer_params, num_heads):
    N, C, H, W = x_nchw.shape
    L = H * W
    hd = C // num_heads
    hi = jax.lax.Precision.HIGHEST
    x = x_nchw.reshape(N, C, L).transpose(2, 0, 1)              # (L, N, C)
    x = x + get_2d_sincos_pos_embed(C, H, W)[:, None, :]

    def ln(v, w, b):
        mu = jnp.mean(v, -1, keepdims=True)
        var = jnp.mean((v - mu) ** 2, -1, keepdims=True)
        return (v - mu) * jax.lax.rsqrt(var + 1e-5) * w + b

    for p in layer_params:
        x2 = ln(x, p["ln1_w"][0], p["ln1_b"][0])
        q = jnp.einsum("lnc,cd->lnd", x2, p["wq"], precision=hi)
        k = jnp.einsum("lnc,cd->lnd", x2, p["wk"], precision=hi)
        v = jnp.einsum("lnc,cd->lnd", x2, p["wv"], precision=hi)
        q = q.reshape(L, N, num_heads, hd).transpose(1, 2, 0, 3)
        k = k.reshape(L, N, num_heads, hd).transpose(1, 2, 0, 3)
        v = v.reshape(L, N, num_heads, hd).transpose(1, 2, 0, 3)
        k_g = k.mean(axis=2, keepdims=True)                      # (N,H,1,hd)
        v_g = v.mean(axis=2)                                     # (N,H,hd)
        attn = jnp.einsum("nhld,nhkd->nhlk", q, k_g, precision=hi) * (hd ** -0.5)
        attn = jax.nn.softmax(attn, axis=-1)                     # (N,H,L,1) == 1
        out = jnp.einsum("nhlk,nhkd->nhld", attn, v_g[:, :, None, :], precision=hi)
        out = out.transpose(2, 0, 1, 3).reshape(L, N, C)
        out = jnp.einsum("lnc,cd->lnd", out, p["wo"], precision=hi) + p["bo"][0]
        x = x + out
        x2 = ln(x, p["ln2_w"][0], p["ln2_b"][0])
        h1 = jax.nn.relu(jnp.einsum("lnc,ch->lnh", x2, p["w1"], precision=hi)
                         + p["b1"][0])
        x = x + jnp.einsum("lnh,hc->lnc", h1, p["w2"], precision=hi) + p["b2"][0]
    return x.transpose(1, 2, 0).reshape(N, C, H, W)


if __name__ == "__main__":
    key = jax.random.PRNGKey(0)
    # Small shapes consistent with the module: N, C(=embed dim), H, W
    N, C, H, W = 2, 32, 8, 8
    num_heads, num_layers = 4, 2

    x = jax.random.normal(jax.random.fold_in(key, 123), (N, C, H, W), jnp.float32)
    params = init_params(jax.random.fold_in(key, 7), C, num_layers)

    y = transformer_module(x, params, num_heads)
    jax.block_until_ready(y)
    assert y.shape == (N, C, H, W) and y.dtype == jnp.float32

    # bf16 MXU operands (f32 accumulation) vs a pure-f32 reference: ~1e-3 error
    # at these shapes, so 1e-2 tolerances remain a meaningful structural check.
    y_ref = reference_forward(x, params, num_heads)
    np.testing.assert_allclose(np.asarray(y), np.asarray(y_ref),
                               rtol=1e-2, atol=1e-2)
    print("KERNEL_OK")
</pallas_src>

<mosaic_0001>
module attributes {stable_mosaic.version = 11 : i64} {
  func.func @fused_layers_kernel(%arg0: i32, %arg1: i32, %arg2: memref<64x128xf32, #tpu.memory_space<vmem>>, %arg3: memref<1x1x128xf32, #tpu.memory_space<vmem>>, %arg4: memref<1x1x128xf32, #tpu.memory_space<vmem>>, %arg5: memref<1x128x128xbf16, #tpu.memory_space<vmem>>, %arg6: memref<1x128x128xbf16, #tpu.memory_space<vmem>>, %arg7: memref<1x1x128xf32, #tpu.memory_space<vmem>>, %arg8: memref<1x1x128xf32, #tpu.memory_space<vmem>>, %arg9: memref<1x1x128xf32, #tpu.memory_space<vmem>>, %arg10: memref<1x128x128xbf16, #tpu.memory_space<vmem>>, %arg11: memref<1x1x128xf32, #tpu.memory_space<vmem>>, %arg12: memref<1x128x128xbf16, #tpu.memory_space<vmem>>, %arg13: memref<1x1x128xf32, #tpu.memory_space<vmem>>, %arg14: memref<64x128xf32, #tpu.memory_space<vmem>>) attributes {dimension_semantics = [#tpu.dimension_semantics<parallel>, #tpu.dimension_semantics<arbitrary>], iteration_bounds = array<i64: 2, 2>, scalar_prefetch = 0 : i64, scratch_operands = 0 : i64, tpu.core_type = #tpu.core_type<tc>, window_params = [{transform_indices = @transform_0, window_bounds = array<i64: 64, 128>}, {transform_indices = @transform_1, window_bounds = array<i64: 1, 1, 128>}, {transform_indices = @transform_2, window_bounds = array<i64: 1, 1, 128>}, {transform_indices = @transform_3, window_bounds = array<i64: 1, 128, 128>}, {transform_indices = @transform_4, window_bounds = array<i64: 1, 128, 128>}, {transform_indices = @transform_5, window_bounds = array<i64: 1, 1, 128>}, {transform_indices = @transform_6, window_bounds = array<i64: 1, 1, 128>}, {transform_indices = @transform_7, window_bounds = array<i64: 1, 1, 128>}, {transform_indices = @transform_8, window_bounds = array<i64: 1, 128, 128>}, {transform_indices = @transform_9, window_bounds = array<i64: 1, 1, 128>}, {transform_indices = @transform_10, window_bounds = array<i64: 1, 128, 128>}, {transform_indices = @transform_11, window_bounds = array<i64: 1, 1, 128>}, {transform_indices = @transform_12, window_bounds = array<i64: 64, 128>}]} {
    %c0_i32 = arith.constant 0 : i32
    %0 = arith.cmpi eq, %arg1, %c0_i32 : i32
    %1 = arith.extui %0 : i1 to i32
    %c0_i32_0 = arith.constant 0 : i32
    %2 = arith.cmpi ne, %1, %c0_i32_0 : i32
    scf.if %2 {
      %c0_53 = arith.constant 0 : index
      %c0_54 = arith.constant 0 : index
      %96 = vector.load %arg2[%c0_53, %c0_54] : memref<64x128xf32, #tpu.memory_space<vmem>>, vector<64x128xf32>
      %c0_55 = arith.constant 0 : index
      %c0_56 = arith.constant 0 : index
      %97 = vector.load %arg14[%c0_55, %c0_56] : memref<64x128xf32, #tpu.memory_space<vmem>>, vector<64x128xf32>
      tpu.vector_store %arg14[%c0_55, %c0_56], %96 {strides = array<i32>} : memref<64x128xf32, #tpu.memory_space<vmem>>, vector<64x128xf32>,
    } else {
    }
    %c0 = arith.constant 0 : index
    %c0_1 = arith.constant 0 : index
    %3 = vector.load %arg14[%c0, %c0_1] : memref<64x128xf32, #tpu.memory_space<vmem>>, vector<64x128xf32>
    %4 = tpu.iota {dimensions = array<i32: 1>} : vector<64x128xi32>
    %c32_i32 = arith.constant 32 : i32
    %5 = vector.broadcast %c32_i32 : i32 to vector<64x128xi32>
    %6 = arith.cmpi slt, %4, %5 : vector<64x128xi32>
    %7 = arith.extui %6 : vector<64x128xi1> to vector<64x128xi32>
    %8 = arith.sitofp %7 : vector<64x128xi32> to vector<64x128xf32>
    %c0_2 = arith.constant 0 : index
    %c0_3 = arith.constant 0 : index
    %c0_4 = arith.constant 0 : index
    %9 = vector.load %arg3[%c0_2, %c0_3, %c0_4] : memref<1x1x128xf32, #tpu.memory_space<vmem>>, vector<1x1x128xf32>
    %10 = vector.shape_cast %9 : vector<1x1x128xf32> to vector<1x128xf32>
    %c0_5 = arith.constant 0 : index
    %c0_6 = arith.constant 0 : index
    %c0_7 = arith.constant 0 : index
    %11 = vector.load %arg4[%c0_5, %c0_6, %c0_7] : memref<1x1x128xf32, #tpu.memory_space<vmem>>, vector<1x1x128xf32>
    %12 = vector.shape_cast %11 : vector<1x1x128xf32> to vector<1x128xf32>
    %cst = arith.constant dense<0.000000e+00> : vector<64xf32>
    %13 = vector.multi_reduction <add>, %3, %cst [1] : vector<64x128xf32> to vector<64xf32>
    %14 = vector.shape_cast %13 : vector<64xf32> to vector<64x1xf32>
    %cst_8 = arith.constant 3.125000e-02 : f32
    %15 = vector.broadcast %cst_8 : f32 to vector<64x1xf32>
    %16 = arith.mulf %14, %15 : vector<64x1xf32>
    %17 = vector.broadcast %16 : vector<64x1xf32> to vector<64x128xf32>
    %18 = arith.subf %3, %17 : vector<64x128xf32>
    %19 = arith.mulf %18, %8 : vector<64x128xf32>
    %20 = arith.mulf %19, %19 : vector<64x128xf32>
    %cst_9 = arith.constant dense<0.000000e+00> : vector<64xf32>
    %21 = vector.multi_reduction <add>, %20, %cst_9 [1] : vector<64x128xf32> to vector<64xf32>
    %22 = vector.shape_cast %21 : vector<64xf32> to vector<64x1xf32>
    %cst_10 = arith.constant 3.125000e-02 : f32
    %23 = vector.broadcast %cst_10 : f32 to vector<64x1xf32>
    %24 = arith.mulf %22, %23 : vector<64x1xf32>
    %cst_11 = arith.constant 9.99999974E-6 : f32
    %25 = vector.broadcast %cst_11 : f32 to vector<64x1xf32>
    %26 = arith.addf %24, %25 : vector<64x1xf32>
    %27 = math.rsqrt %26 : vector<64x1xf32>
    %28 = vector.broadcast %27 : vector<64x1xf32> to vector<64x128xf32>
    %29 = arith.mulf %19, %28 : vector<64x128xf32>
    %30 = vector.broadcast %10 : vector<1x128xf32> to vector<64x128xf32>
    %31 = arith.mulf %29, %30 : vector<64x128xf32>
    %32 = vector.broadcast %12 : vector<1x128xf32> to vector<64x128xf32>
    %33 = arith.addf %31, %32 : vector<64x128xf32>
    %34 = arith.truncf %33 : vector<64x128xf32> to vector<64x128xbf16>
    %c0_12 = arith.constant 0 : index
    %c0_13 = arith.constant 0 : index
    %c0_14 = arith.constant 0 : index
    %35 = vector.load %arg5[%c0_12, %c0_13, %c0_14] : memref<1x128x128xbf16, #tpu.memory_space<vmem>>, vector<1x128x128xbf16>
    %36 = vector.shape_cast %35 : vector<1x128x128xbf16> to vector<128x128xbf16>
    %cst_15 = arith.constant dense<0.000000e+00> : vector<64x128xf32>
    %37 = tpu.matmul %34, %36, %cst_15 {dimension_numbers = #tpu.dot_dimension_numbers<[1], [0], [0], [1], [0, 0, 1, 1], [], []>} : vector<64x128xbf16>, vector<128x128xbf16>, vector<64x128xf32> -> vector<64x128xf32>
    %cst_16 = arith.constant dense<0.000000e+00> : vector<128xf32>
    %38 = vector.multi_reduction <add>, %37, %cst_16 [0] : vector<64x128xf32> to vector<128xf32>
    %39 = vector.shape_cast %38 : vector<128xf32> to vector<1x128xf32>
    %cst_17 = arith.constant 1.562500e-02 : f32
    %40 = vector.broadcast %cst_17 : f32 to vector<1x128xf32>
    %41 = arith.mulf %39, %40 : vector<1x128xf32>
    %42 = arith.truncf %41 : vector<1x128xf32> to vector<1x128xbf16>
    %c0_18 = arith.constant 0 : index
    %c0_19 = arith.constant 0 : index
    %c0_20 = arith.constant 0 : index
    %43 = vector.load %arg6[%c0_18, %c0_19, %c0_20] : memref<1x128x128xbf16, #tpu.memory_space<vmem>>, vector<1x128x128xbf16>
    %44 = vector.shape_cast %43 : vector<1x128x128xbf16> to vector<128x128xbf16>
    %cst_21 = arith.constant dense<0.000000e+00> : vector<1x128xf32>
    %45 = tpu.matmul %42, %44, %cst_21 {dimension_numbers = #tpu.dot_dimension_numbers<[1], [0], [0], [1], [0, 0, 1, 1], [], []>} : vector<1x128xbf16>, vector<128x128xbf16>, vector<1x128xf32> -> vector<1x128xf32>
    %c0_22 = arith.constant 0 : index
    %c0_23 = arith.constant 0 : index
    %c0_24 = arith.constant 0 : index
    %46 = vector.load %arg7[%c0_22, %c0_23, %c0_24] : memref<1x1x128xf32, #tpu.memory_space<vmem>>, vector<1x1x128xf32>
    %47 = vector.shape_cast %46 : vector<1x1x128xf32> to vector<1x128xf32>
    %48 = arith.addf %45, %47 : vector<1x128xf32>
    %49 = vector.broadcast %48 : vector<1x128xf32> to vector<64x128xf32>
    %50 = arith.addf %3, %49 : vector<64x128xf32>
    %c0_25 = arith.constant 0 : index
    %c0_26 = arith.constant 0 : index
    %c0_27 = arith.constant 0 : index
    %51 = vector.load %arg8[%c0_25, %c0_26, %c0_27] : memref<1x1x128xf32, #tpu.memory_space<vmem>>, vector<1x1x128xf32>
    %52 = vector.shape_cast %51 : vector<1x1x128xf32> to vector<1x128xf32>
    %c0_28 = arith.constant 0 : index
    %c0_29 = arith.constant 0 : index
    %c0_30 = arith.constant 0 : index
    %53 = vector.load %arg9[%c0_28, %c0_29, %c0_30] : memref<1x1x128xf32, #tpu.memory_space<vmem>>, vector<1x1x128xf32>
    %54 = vector.shape_cast %53 : vector<1x1x128xf32> to vector<1x128xf32>
    %cst_31 = arith.constant dense<0.000000e+00> : vector<64xf32>
    %55 = vector.multi_reduction <add>, %50, %cst_31 [1] : vector<64x128xf32> to vector<64xf32>
    %56 = vector.shape_cast %55 : vector<64xf32> to vector<64x1xf32>
    %cst_32 = arith.constant 3.125000e-02 : f32
    %57 = vector.broadcast %cst_32 : f32 to vector<64x1xf32>
    %58 = arith.mulf %56, %57 : vector<64x1xf32>
    %59 = vector.broadcast %58 : vector<64x1xf32> to vector<64x128xf32>
    %60 = arith.subf %50, %59 : vector<64x128xf32>
    %61 = arith.mulf %60, %8 : vector<64x128xf32>
    %62 = arith.mulf %61, %61 : vector<64x128xf32>
    %cst_33 = arith.constant dense<0.000000e+00> : vector<64xf32>
    %63 = vector.multi_reduction <add>, %62, %cst_33 [1] : vector<64x128xf32> to vector<64xf32>
    %64 = vector.shape_cast %63 : vector<64xf32> to vector<64x1xf32>
    %cst_34 = arith.constant 3.125000e-02 : f32
    %65 = vector.broadcast %cst_34 : f32 to vector<64x1xf32>
    %66 = arith.mulf %64, %65 : vector<64x1xf32>
    %cst_35 = arith.constant 9.99999974E-6 : f32
    %67 = vector.broadcast %cst_35 : f32 to vector<64x1xf32>
    %68 = arith.addf %66, %67 : vector<64x1xf32>
    %69 = math.rsqrt %68 : vector<64x1xf32>
    %70 = vector.broadcast %69 : vector<64x1xf32> to vector<64x128xf32>
    %71 = arith.mulf %61, %70 : vector<64x128xf32>
    %72 = vector.broadcast %52 : vector<1x128xf32> to vector<64x128xf32>
    %73 = arith.mulf %71, %72 : vector<64x128xf32>
    %74 = vector.broadcast %54 : vector<1x128xf32> to vector<64x128xf32>
    %75 = arith.addf %73, %74 : vector<64x128xf32>
    %76 = arith.truncf %75 : vector<64x128xf32> to vector<64x128xbf16>
    %c0_36 = arith.constant 0 : index
    %c0_37 = arith.constant 0 : index
    %c0_38 = arith.constant 0 : index
    %77 = vector.load %arg10[%c0_36, %c0_37, %c0_38] : memref<1x128x128xbf16, #tpu.memory_space<vmem>>, vector<1x128x128xbf16>
    %78 = vector.shape_cast %77 : vector<1x128x128xbf16> to vector<128x128xbf16>
    %cst_39 = arith.constant dense<0.000000e+00> : vector<64x128xf32>
    %79 = tpu.matmul %76, %78, %cst_39 {dimension_numbers = #tpu.dot_dimension_numbers<[1], [0], [0], [1], [0, 0, 1, 1], [], []>} : vector<64x128xbf16>, vector<128x128xbf16>, vector<64x128xf32> -> vector<64x128xf32>
    %c0_40 = arith.constant 0 : index
    %c0_41 = arith.constant 0 : index
    %c0_42 = arith.constant 0 : index
    %80 = vector.load %arg11[%c0_40, %c0_41, %c0_42] : memref<1x1x128xf32, #tpu.memory_space<vmem>>, vector<1x1x128xf32>
    %81 = vector.shape_cast %80 : vector<1x1x128xf32> to vector<1x128xf32>
    %82 = vector.broadcast %81 : vector<1x128xf32> to vector<64x128xf32>
    %83 = arith.addf %79, %82 : vector<64x128xf32>
    %cst_43 = arith.constant 0.000000e+00 : f32
    %84 = vector.broadcast %cst_43 : f32 to vector<64x128xf32>
    %85 = arith.maximumf %83, %84 : vector<64x128xf32>
    %86 = arith.truncf %85 : vector<64x128xf32> to vector<64x128xbf16>
    %c0_44 = arith.constant 0 : index
    %c0_45 = arith.constant 0 : index
    %c0_46 = arith.constant 0 : index
    %87 = vector.load %arg12[%c0_44, %c0_45, %c0_46] : memref<1x128x128xbf16, #tpu.memory_space<vmem>>, vector<1x128x128xbf16>
    %88 = vector.shape_cast %87 : vector<1x128x128xbf16> to vector<128x128xbf16>
    %cst_47 = arith.constant dense<0.000000e+00> : vector<64x128xf32>
    %89 = tpu.matmul %86, %88, %cst_47 {dimension_numbers = #tpu.dot_dimension_numbers<[1], [0], [0], [1], [0, 0, 1, 1], [], []>} : vector<64x128xbf16>, vector<128x128xbf16>, vector<64x128xf32> -> vector<64x128xf32>
    %c0_48 = arith.constant 0 : index
    %c0_49 = arith.constant 0 : index
    %c0_50 = arith.constant 0 : index
    %90 = vector.load %arg13[%c0_48, %c0_49, %c0_50] : memref<1x1x128xf32, #tpu.memory_space<vmem>>, vector<1x1x128xf32>
    %91 = vector.shape_cast %90 : vector<1x1x128xf32> to vector<1x128xf32>
    %92 = vector.broadcast %91 : vector<1x128xf32> to vector<64x128xf32>
    %93 = arith.addf %89, %92 : vector<64x128xf32>
    %94 = arith.addf %50, %93 : vector<64x128xf32>
    %c0_51 = arith.constant 0 : index
    %c0_52 = arith.constant 0 : index
    %95 = vector.load %arg14[%c0_51, %c0_52] : memref<64x128xf32, #tpu.memory_space<vmem>>, vector<64x128xf32>
    tpu.vector_store %arg14[%c0_51, %c0_52], %94 {strides = array<i32>} : memref<64x128xf32, #tpu.memory_space<vmem>>, vector<64x128xf32>,
    return
  }
  func.func @transform_0(%arg0: i32, %arg1: i32) -> (i32, i32) {
    %c0_i32 = arith.constant 0 : i32
    %c0_i32_0 = arith.constant 0 : i32
    return %arg0, %c0_i32 : i32, i32
  }
  func.func @transform_1(%arg0: i32, %arg1: i32) -> (i32, i32, i32) {
    %c0_i32 = arith.constant 0 : i32
    %c0_i32_0 = arith.constant 0 : i32
    %c0_i32_1 = arith.constant 0 : i32
    return %arg1, %c0_i32, %c0_i32_0 : i32, i32, i32
  }
  func.func @transform_2(%arg0: i32, %arg1: i32) -> (i32, i32, i32) {
    %c0_i32 = arith.constant 0 : i32
    %c0_i32_0 = arith.constant 0 : i32
    %c0_i32_1 = arith.constant 0 : i32
    return %arg1, %c0_i32, %c0_i32_0 : i32, i32, i32
  }
  func.func @transform_3(%arg0: i32, %arg1: i32) -> (i32, i32, i32) {
    %c0_i32 = arith.constant 0 : i32
    %c0_i32_0 = arith.constant 0 : i32
    %c0_i32_1 = arith.constant 0 : i32
    return %arg1, %c0_i32, %c0_i32_0 : i32, i32, i32
  }
  func.func @transform_4(%arg0: i32, %arg1: i32) -> (i32, i32, i32) {
    %c0_i32 = arith.constant 0 : i32
    %c0_i32_0 = arith.constant 0 : i32
    %c0_i32_1 = arith.constant 0 : i32
    return %arg1, %c0_i32, %c0_i32_0 : i32, i32, i32
  }
  func.func @transform_5(%arg0: i32, %arg1: i32) -> (i32, i32, i32) {
    %c0_i32 = arith.constant 0 : i32
    %c0_i32_0 = arith.constant 0 : i32
    %c0_i32_1 = arith.constant 0 : i32
    return %arg1, %c0_i32, %c0_i32_0 : i32, i32, i32
  }
  func.func @transform_6(%arg0: i32, %arg1: i32) -> (i32, i32, i32) {
    %c0_i32 = arith.constant 0 : i32
    %c0_i32_0 = arith.constant 0 : i32
    %c0_i32_1 = arith.constant 0 : i32
    return %arg1, %c0_i32, %c0_i32_0 : i32, i32, i32
  }
  func.func @transform_7(%arg0: i32, %arg1: i32) -> (i32, i32, i32) {
    %c0_i32 = arith.constant 0 : i32
    %c0_i32_0 = arith.constant 0 : i32
    %c0_i32_1 = arith.constant 0 : i32
    return %arg1, %c0_i32, %c0_i32_0 : i32, i32, i32
  }
  func.func @transform_8(%arg0: i32, %arg1: i32) -> (i32, i32, i32) {
    %c0_i32 = arith.constant 0 : i32
    %c0_i32_0 = arith.constant 0 : i32
    %c0_i32_1 = arith.constant 0 : i32
    return %arg1, %c0_i32, %c0_i32_0 : i32, i32, i32
  }
  func.func @transform_9(%arg0: i32, %arg1: i32) -> (i32, i32, i32) {
    %c0_i32 = arith.constant 0 : i32
    %c0_i32_0 = arith.constant 0 : i32
    %c0_i32_1 = arith.constant 0 : i32
    return %arg1, %c0_i32, %c0_i32_0 : i32, i32, i32
  }
  func.func @transform_10(%arg0: i32, %arg1: i32) -> (i32, i32, i32) {
    %c0_i32 = arith.constant 0 : i32
    %c0_i32_0 = arith.constant 0 : i32
    %c0_i32_1 = arith.constant 0 : i32
    return %arg1, %c0_i32, %c0_i32_0 : i32, i32, i32
  }
  func.func @transform_11(%arg0: i32, %arg1: i32) -> (i32, i32, i32) {
    %c0_i32 = arith.constant 0 : i32
    %c0_i32_0 = arith.constant 0 : i32
    %c0_i32_1 = arith.constant 0 : i32
    return %arg1, %c0_i32, %c0_i32_0 : i32, i32, i32
  }
  func.func @transform_12(%arg0: i32, %arg1: i32) -> (i32, i32) {
    %c0_i32 = arith.constant 0 : i32
    %c0_i32_0 = arith.constant 0 : i32
    return %arg0, %c0_i32 : i32, i32
  }
}

</mosaic_0001>

<llo_original>
// kernel: tpu_custom_call.1
$region0: #{tpu_custom_call.1}
  #allocation0 [shape = 'u32[]', space=smem, size = 0x4, offset = 0x4, fixed_abs, tag = 'smem constant byte address 0x4 - core index']
  #allocation1 [shape = 'u32[144,128]{1,0:T(1,128)}', space=vmem, size = 0x12000, scoped, tag = 'internal scratch']
  %s0 = inlined_call_operand.hbm [shape: f32[128,128], index: 0, kind: input, shape index: {}]
  %s1 = inlined_call_operand.vmem [shape: f32[2,1,128], index: 1, kind: input, shape index: {}]
  %s2 = inlined_call_operand.vmem [shape: f32[2,1,128], index: 2, kind: input, shape index: {}]
  %s3 = inlined_call_operand.hbm [shape: bf16[2,128,128], index: 3, kind: input, shape index: {}]
  %s4 = inlined_call_operand.hbm [shape: bf16[2,128,128], index: 4, kind: input, shape index: {}]
  %s5 = inlined_call_operand.vmem [shape: f32[2,1,128], index: 5, kind: input, shape index: {}]
  %s6 = inlined_call_operand.vmem [shape: f32[2,1,128], index: 6, kind: input, shape index: {}]
  %s7 = inlined_call_operand.vmem [shape: f32[2,1,128], index: 7, kind: input, shape index: {}]
  %s8 = inlined_call_operand.hbm [shape: bf16[2,128,128], index: 8, kind: input, shape index: {}]
  %s9 = inlined_call_operand.vmem [shape: f32[2,1,128], index: 9, kind: input, shape index: {}]
  %s10 = inlined_call_operand.hbm [shape: bf16[2,128,128], index: 10, kind: input, shape index: {}]
  %s11 = inlined_call_operand.vmem [shape: f32[2,1,128], index: 11, kind: input, shape index: {}]
  %s12 = inlined_call_operand.hbm [shape: f32[128,128], index: 12, kind: output, shape index: {}]
  %s13 = sld [smem:[#allocation0]]
  $region105: #{tpu_custom_call.1} parent=0
    _
  %s15 = ssub.s32 1, %s13
  %s16 = scalar_select 0, %s15, %s13
  $region1: #{tpu_custom_call.1} parent=0
    #allocation2 [shape = 'u8[65536]{0}', space=vmem, size = 0x10000, scoped, tag = 'input window, operand 0']
    #allocation3 [shape = 's32[2]{0}', space=sflag, size = 0x8, scoped, tag = 'scoped memory for tpu_custom_call.1']
    #allocation4 [shape = 's32[2]{0}', space=sflag, size = 0x8, scoped, tag = 'scoped memory for tpu_custom_call.1']
    #allocation5 [shape = 'u8[65536]{0}', space=vmem, size = 0x10000, scoped, tag = 'input window, operand 3']
    #allocation6 [shape = 's32[2]{0}', space=sflag, size = 0x8, scoped, tag = 'scoped memory for tpu_custom_call.1']
    #allocation7 [shape = 'u8[65536]{0}', space=vmem, size = 0x10000, scoped, tag = 'input window, operand 4']
    #allocation8 [shape = 'u8[65536]{0}', space=vmem, size = 0x10000, scoped, tag = 'input window, operand 8']
    #allocation9 [shape = 's32[2]{0}', space=sflag, size = 0x8, scoped, tag = 'scoped memory for tpu_custom_call.1']
    #allocation10 [shape = 'u8[65536]{0}', space=vmem, size = 0x10000, scoped, tag = 'input window, operand 10']
    #allocation11 [shape = 'u8[65536]{0}', space=vmem, size = 0x10000, scoped, tag = 'output window, operand 0']
    %17 = vsyncpa [#allocation3], 0
    %s18 = scalar_lea.sflag [#allocation3], 1
    %19 = vsyncpa %s18, 0
    %20 = vsyncpa [#allocation6], 0
    %s21 = scalar_lea.sflag [#allocation6], 1
    %22 = vsyncpa %s21, 0
    %23 = vsyncpa [#allocation9], 0
    %s24 = scalar_lea.sflag [#allocation9], 1
    %25 = vsyncpa %s24, 0
    %26 = vsyncpa [#allocation4], 0
    %s27 = scalar_lea.sflag [#allocation4], 1
    %28 = vsyncpa %s27, 0
    loop: start=0, step=1, limit=6
    $region2: #{tpu_custom_call.1} parent=1 // loop_pre_header
      _
    $region3: #{tpu_custom_call.1} parent=1 // loop_header
      %s30 = sphi 0, %s34
      %p31 = scmp.ge.s32.totalorder %s30, 6
      %s37 = sphi 0, %s49
      %s38 = sphi 0, %s45
      %s39 = sphi 0, %s37
      %s40 = sphi 0, %s38
      %s41 = sphi 0, %s39
      %s42 = sphi 0, %s40
      %s52 = sphi 0, %s54
      %s55 = sphi 0, %s52
      %s56 = sphi 0, %s55
      %s72 = sphi 0, %s56
      %s78 = sphi 0, %s80
      %s81 = sphi 0, %s78
      %s82 = sphi 0, %s81
      %s98 = sphi 0, %s82
      %s104 = sphi 0, %s106
      %s107 = sphi 0, %s104
      %s108 = sphi 0, %s107
      %s124 = sphi 0, %s108
      %s130 = sphi 0, %s132
      %s133 = sphi 0, %s130
      %s134 = sphi 0, %s133
      %s150 = sphi 0, %s134
      %s156 = sphi 0, %s158
      %s159 = sphi 0, %s156
      %s160 = sphi 0, %s159
      %s176 = sphi 0, %s160
      %s182 = sphi 0, %s184
      %s185 = sphi 0, %s182
      %s186 = sphi 0, %s185
      %s202 = sphi 0, %s186
      %s208 = sphi 0, %s210
      %s211 = sphi 0, %s208
      %s212 = sphi 0, %s211
      %s228 = sphi 0, %s212
      %s234 = sphi 0, %s236
      %s237 = sphi 0, %s234
      %s238 = sphi 0, %s237
      %s254 = sphi 0, %s238
      %s260 = sphi 0, %s262
      %s263 = sphi 0, %s260
      %s264 = sphi 0, %s263
      %s280 = sphi 0, %s264
      %s286 = sphi 0, %s288
      %s289 = sphi 0, %s286
      %s290 = sphi 0, %s289
      %s306 = sphi 0, %s290
      %s312 = sphi 0, %s314
      %s315 = sphi 0, %s312
      %s316 = sphi 0, %s315
      %s332 = sphi 0, %s316
      %s338 = sphi 0, %s340
      %s341 = sphi 0, %s338
      %s342 = sphi 0, %s341
      %s358 = sphi 0, %s342
      %s364 = sphi 0, %s366
      %s367 = sphi 0, %s364
      %s368 = sphi 0, %s367
      %s384 = sphi 0, %s368
    $region4: #{tpu_custom_call.1} parent=1 // loop_header_branch
      %33 = sbr.rel (%p31) target = $region8
    $region5: #{tpu_custom_call.1} parent=1 // loop_body
      %s35 = ssub.s32 %s30, 1
      %s36 = ssub.s32 %s30, 2
      %s43 = sadd.s32 1, %s38
      %p44 = scmp.ge.s32.totalorder %s43, 2
      %s45 = scalar_select %p44, 0, %s43
      %s46 = sadd.s32 1, %s37
      %s47 = scalar_select %p44, %s46, %s37
      %p48 = scmp.ge.s32.totalorder %s47, 2
      %s49 = scalar_select %p48, 0, %s47
      %s50 = ssub.s32 %s37, %s49
      %p51 = scmp.eq.s32.totalorder %s50, 0
      %s53 = sadd.s32 %s52, 1
      %s54 = scalar_select %p51, %s52, %s53
      %p57 = pneg %p51
      %p58 = scmp.eq.s32.totalorder %s30, 3
      %p59 = por %p57, %p58
      %p60 = scmp.ne.s32.totalorder %s52, %s55
      %p61 = scmp.eq.s32.totalorder %s30, 0
      %p62 = por %p60, %p61
      %p63 = scmp.ne.s32.totalorder %s52, %s55
      %p64 = scmp.eq.s32.totalorder %s35, 3
      %p65 = por %p63, %p64
      %p66 = scmp.ne.s32.totalorder %s55, %s56
      %p67 = scmp.eq.s32.totalorder %s35, 0
      %p68 = por %p66, %p67
      %p69 = scmp.ne.s32.totalorder %s55, %s56
      %p70 = scmp.eq.s32.totalorder %s36, 3
      %p71 = por %p69, %p70
      %p73 = scmp.ne.s32.totalorder %s56, %s72
      %p74 = scmp.eq.s32.totalorder %s36, 0
      %p75 = por %p73, %p74
      %s76 = ssub.s32 %s38, %s45
      %p77 = scmp.eq.s32.totalorder %s76, 0
      %s79 = sadd.s32 %s78, 1
      %s80 = scalar_select %p77, %s78, %s79
      %p83 = pneg %p77
      %p84 = scmp.eq.s32.totalorder %s30, 3
      %p85 = por %p83, %p84
      %p86 = scmp.ne.s32.totalorder %s78, %s81
      %p87 = scmp.eq.s32.totalorder %s30, 0
      %p88 = por %p86, %p87
      %p89 = scmp.ne.s32.totalorder %s78, %s81
      %p90 = scmp.eq.s32.totalorder %s35, 3
      %p91 = por %p89, %p90
      %p92 = scmp.ne.s32.totalorder %s81, %s82
      %p93 = scmp.eq.s32.totalorder %s35, 0
      %p94 = por %p92, %p93
      %p95 = scmp.ne.s32.totalorder %s81, %s82
      %p96 = scmp.eq.s32.totalorder %s36, 3
      %p97 = por %p95, %p96
      %p99 = scmp.ne.s32.totalorder %s82, %s98
      %p100 = scmp.eq.s32.totalorder %s36, 0
      %p101 = por %p99, %p100
      %s102 = ssub.s32 %s38, %s45
      %p103 = scmp.eq.s32.totalorder %s102, 0
      %s105 = sadd.s32 %s104, 1
      %s106 = scalar_select %p103, %s104, %s105
      %p109 = pneg %p103
      %p110 = scmp.eq.s32.totalorder %s30, 3
      %p111 = por %p109, %p110
      %p112 = scmp.ne.s32.totalorder %s104, %s107
      %p113 = scmp.eq.s32.totalorder %s30, 0
      %p114 = por %p112, %p113
      %p115 = scmp.ne.s32.totalorder %s104, %s107
      %p116 = scmp.eq.s32.totalorder %s35, 3
      %p117 = por %p115, %p116
      %p118 = scmp.ne.s32.totalorder %s107, %s108
      %p119 = scmp.eq.s32.totalorder %s35, 0
      %p120 = por %p118, %p119
      %p121 = scmp.ne.s32.totalorder %s107, %s108
      %p122 = scmp.eq.s32.totalorder %s36, 3
      %p123 = por %p121, %p122
      %p125 = scmp.ne.s32.totalorder %s108, %s124
      %p126 = scmp.eq.s32.totalorder %s36, 0
      %p127 = por %p125, %p126
      %s128 = ssub.s32 %s38, %s45
      %p129 = scmp.eq.s32.totalorder %s128, 0
      %s131 = sadd.s32 %s130, 1
      %s132 = scalar_select %p129, %s130, %s131
      %p135 = pneg %p129
      %p136 = scmp.eq.s32.totalorder %s30, 3
      %p137 = por %p135, %p136
      %p138 = scmp.ne.s32.totalorder %s130, %s133
      %p139 = scmp.eq.s32.totalorder %s30, 0
      %p140 = por %p138, %p139
      %p141 = scmp.ne.s32.totalorder %s130, %s133
      %p142 = scmp.eq.s32.totalorder %s35, 3
      %p143 = por %p141, %p142
      %p144 = scmp.ne.s32.totalorder %s133, %s134
      %p145 = scmp.eq.s32.totalorder %s35, 0
      %p146 = por %p144, %p145
      %p147 = scmp.ne.s32.totalorder %s133, %s134
      %p148 = scmp.eq.s32.totalorder %s36, 3
      %p149 = por %p147, %p148
      %p151 = scmp.ne.s32.totalorder %s134, %s150
      %p152 = scmp.eq.s32.totalorder %s36, 0
      %p153 = por %p151, %p152
      %s154 = ssub.s32 %s38, %s45
      %p155 = scmp.eq.s32.totalorder %s154, 0
      %s157 = sadd.s32 %s156, 1
      %s158 = scalar_select %p155, %s156, %s157
      %p161 = pneg %p155
      %p162 = scmp.eq.s32.totalorder %s30, 3
      %p163 = por %p161, %p162
      %p164 = scmp.ne.s32.totalorder %s156, %s159
      %p165 = scmp.eq.s32.totalorder %s30, 0
      %p166 = por %p164, %p165
      %p167 = scmp.ne.s32.totalorder %s156, %s159
      %p168 = scmp.eq.s32.totalorder %s35, 3
      %p169 = por %p167, %p168
      %p170 = scmp.ne.s32.totalorder %s159, %s160
      %p171 = scmp.eq.s32.totalorder %s35, 0
      %p172 = por %p170, %p171
      %p173 = scmp.ne.s32.totalorder %s159, %s160
      %p174 = scmp.eq.s32.totalorder %s36, 3
      %p175 = por %p173, %p174
      %p177 = scmp.ne.s32.totalorder %s160, %s176
      %p178 = scmp.eq.s32.totalorder %s36, 0
      %p179 = por %p177, %p178
      %s180 = ssub.s32 %s38, %s45
      %p181 = scmp.eq.s32.totalorder %s180, 0
      %s183 = sadd.s32 %s182, 1
      %s184 = scalar_select %p181, %s182, %s183
      %p187 = pneg %p181
      %p188 = scmp.eq.s32.totalorder %s30, 3
      %p189 = por %p187, %p188
      %p190 = scmp.ne.s32.totalorder %s182, %s185
      %p191 = scmp.eq.s32.totalorder %s30, 0
      %p192 = por %p190, %p191
      %p193 = scmp.ne.s32.totalorder %s182, %s185
      %p194 = scmp.eq.s32.totalorder %s35, 3
      %p195 = por %p193, %p194
      %p196 = scmp.ne.s32.totalorder %s185, %s186
      %p197 = scmp.eq.s32.totalorder %s35, 0
      %p198 = por %p196, %p197
      %p199 = scmp.ne.s32.totalorder %s185, %s186
      %p200 = scmp.eq.s32.totalorder %s36, 3
      %p201 = por %p199, %p200
      %p203 = scmp.ne.s32.totalorder %s186, %s202
      %p204 = scmp.eq.s32.totalorder %s36, 0
      %p205 = por %p203, %p204
      %s206 = ssub.s32 %s38, %s45
      %p207 = scmp.eq.s32.totalorder %s206, 0
      %s209 = sadd.s32 %s208, 1
      %s210 = scalar_select %p207, %s208, %s209
      %p213 = pneg %p207
      %p214 = scmp.eq.s32.totalorder %s30, 3
      %p215 = por %p213, %p214
      %p216 = scmp.ne.s32.totalorder %s208, %s211
      %p217 = scmp.eq.s32.totalorder %s30, 0
      %p218 = por %p216, %p217
      %p219 = scmp.ne.s32.totalorder %s208, %s211
      %p220 = scmp.eq.s32.totalorder %s35, 3
      %p221 = por %p219, %p220
      %p222 = scmp.ne.s32.totalorder %s211, %s212
      %p223 = scmp.eq.s32.totalorder %s35, 0
      %p224 = por %p222, %p223
      %p225 = scmp.ne.s32.totalorder %s211, %s212
      %p226 = scmp.eq.s32.totalorder %s36, 3
      %p227 = por %p225, %p226
      %p229 = scmp.ne.s32.totalorder %s212, %s228
      %p230 = scmp.eq.s32.totalorder %s36, 0
      %p231 = por %p229, %p230
      %s232 = ssub.s32 %s38, %s45
      %p233 = scmp.eq.s32.totalorder %s232, 0
      %s235 = sadd.s32 %s234, 1
      %s236 = scalar_select %p233, %s234, %s235
      %p239 = pneg %p233
      %p240 = scmp.eq.s32.totalorder %s30, 3
      %p241 = por %p239, %p240
      %p242 = scmp.ne.s32.totalorder %s234, %s237
      %p243 = scmp.eq.s32.totalorder %s30, 0
      %p244 = por %p242, %p243
      %p245 = scmp.ne.s32.totalorder %s234, %s237
      %p246 = scmp.eq.s32.totalorder %s35, 3
      %p247 = por %p245, %p246
      %p248 = scmp.ne.s32.totalorder %s237, %s238
      %p249 = scmp.eq.s32.totalorder %s35, 0
      %p250 = por %p248, %p249
      %p251 = scmp.ne.s32.totalorder %s237, %s238
      %p252 = scmp.eq.s32.totalorder %s36, 3
      %p253 = por %p251, %p252
      %p255 = scmp.ne.s32.totalorder %s238, %s254
      %p256 = scmp.eq.s32.totalorder %s36, 0
      %p257 = por %p255, %p256
      %s258 = ssub.s32 %s38, %s45
      %p259 = scmp.eq.s32.totalorder %s258, 0
      %s261 = sadd.s32 %s260, 1
      %s262 = scalar_select %p259, %s260, %s261
      %p265 = pneg %p259
      %p266 = scmp.eq.s32.totalorder %s30, 3
      %p267 = por %p265, %p266
      %p268 = scmp.ne.s32.totalorder %s260, %s263
      %p269 = scmp.eq.s32.totalorder %s30, 0
      %p270 = por %p268, %p269
      %p271 = scmp.ne.s32.totalorder %s260, %s263
      %p272 = scmp.eq.s32.totalorder %s35, 3
      %p273 = por %p271, %p272
      %p274 = scmp.ne.s32.totalorder %s263, %s264
      %p275 = scmp.eq.s32.totalorder %s35, 0
      %p276 = por %p274, %p275
      %p277 = scmp.ne.s32.totalorder %s263, %s264
      %p278 = scmp.eq.s32.totalorder %s36, 3
      %p279 = por %p277, %p278
      %p281 = scmp.ne.s32.totalorder %s264, %s280
      %p282 = scmp.eq.s32.totalorder %s36, 0
      %p283 = por %p281, %p282
      %s284 = ssub.s32 %s38, %s45
      %p285 = scmp.eq.s32.totalorder %s284, 0
      %s287 = sadd.s32 %s286, 1
      %s288 = scalar_select %p285, %s286, %s287
      %p291 = pneg %p285
      %p292 = scmp.eq.s32.totalorder %s30, 3
      %p293 = por %p291, %p292
      %p294 = scmp.ne.s32.totalorder %s286, %s289
      %p295 = scmp.eq.s32.totalorder %s30, 0
      %p296 = por %p294, %p295
      %p297 = scmp.ne.s32.totalorder %s286, %s289
      %p298 = scmp.eq.s32.totalorder %s35, 3
      %p299 = por %p297, %p298
      %p300 = scmp.ne.s32.totalorder %s289, %s290
      %p301 = scmp.eq.s32.totalorder %s35, 0
      %p302 = por %p300, %p301
      %p303 = scmp.ne.s32.totalorder %s289, %s290
      %p304 = scmp.eq.s32.totalorder %s36, 3
      %p305 = por %p303, %p304
      %p307 = scmp.ne.s32.totalorder %s290, %s306
      %p308 = scmp.eq.s32.totalorder %s36, 0
      %p309 = por %p307, %p308
      %s310 = ssub.s32 %s38, %s45
      %p311 = scmp.eq.s32.totalorder %s310, 0
      %s313 = sadd.s32 %s312, 1
      %s314 = scalar_select %p311, %s312, %s313
      %p317 = pneg %p311
      %p318 = scmp.eq.s32.totalorder %s30, 3
      %p319 = por %p317, %p318
      %p320 = scmp.ne.s32.totalorder %s312, %s315
      %p321 = scmp.eq.s32.totalorder %s30, 0
      %p322 = por %p320, %p321
      %p323 = scmp.ne.s32.totalorder %s312, %s315
      %p324 = scmp.eq.s32.totalorder %s35, 3
      %p325 = por %p323, %p324
      %p326 = scmp.ne.s32.totalorder %s315, %s316
      %p327 = scmp.eq.s32.totalorder %s35, 0
      %p328 = por %p326, %p327
      %p329 = scmp.ne.s32.totalorder %s315, %s316
      %p330 = scmp.eq.s32.totalorder %s36, 3
      %p331 = por %p329, %p330
      %p333 = scmp.ne.s32.totalorder %s316, %s332
      %p334 = scmp.eq.s32.totalorder %s36, 0
      %p335 = por %p333, %p334
      %s336 = ssub.s32 %s38, %s45
      %p337 = scmp.eq.s32.totalorder %s336, 0
      %s339 = sadd.s32 %s338, 1
      %s340 = scalar_select %p337, %s338, %s339
      %p343 = pneg %p337
      %p344 = scmp.eq.s32.totalorder %s30, 3
      %p345 = por %p343, %p344
      %p346 = scmp.ne.s32.totalorder %s338, %s341
      %p347 = scmp.eq.s32.totalorder %s30, 0
      %p348 = por %p346, %p347
      %p349 = scmp.ne.s32.totalorder %s338, %s341
      %p350 = scmp.eq.s32.totalorder %s35, 3
      %p351 = por %p349, %p350
      %p352 = scmp.ne.s32.totalorder %s341, %s342
      %p353 = scmp.eq.s32.totalorder %s35, 0
      %p354 = por %p352, %p353
      %p355 = scmp.ne.s32.totalorder %s341, %s342
      %p356 = scmp.eq.s32.totalorder %s36, 3
      %p357 = por %p355, %p356
      %p359 = scmp.ne.s32.totalorder %s342, %s358
      %p360 = scmp.eq.s32.totalorder %s36, 0
      %p361 = por %p359, %p360
      %s362 = ssub.s32 %s37, %s49
      %p363 = scmp.eq.s32.totalorder %s362, 0
      %s365 = sadd.s32 %s364, 1
      %s366 = scalar_select %p363, %s364, %s365
      %p369 = pneg %p363
      %p370 = scmp.eq.s32.totalorder %s30, 3
      %p371 = por %p369, %p370
      %p372 = scmp.ne.s32.totalorder %s364, %s367
      %p373 = scmp.eq.s32.totalorder %s30, 0
      %p374 = por %p372, %p373
      %p375 = scmp.ne.s32.totalorder %s364, %s367
      %p376 = scmp.eq.s32.totalorder %s35, 3
      %p377 = por %p375, %p376
      %p378 = scmp.ne.s32.totalorder %s367, %s368
      %p379 = scmp.eq.s32.totalorder %s35, 0
      %p380 = por %p378, %p379
      %p381 = scmp.ne.s32.totalorder %s367, %s368
      %p382 = scmp.eq.s32.totalorder %s36, 3
      %p383 = por %p381, %p382
      %p385 = scmp.ne.s32.totalorder %s368, %s384
      %p386 = scmp.eq.s32.totalorder %s36, 0
      %p387 = por %p385, %p386
      %p388 = scmp.le.s32.totalorder 1, %s30
      %p389 = scmp.lt.s32.totalorder %s30, 5
      %p390 = pnand %p388, %p389
      %p391 = pneg %p390
      // Predicated region
      $region9: #{tpu_custom_call.1} parent=5 // pred_check
        _
      $region10: #{tpu_custom_call.1} parent=5 // pred_check_branch
        %393 = sbr.rel (%p390) target = $region12
      $region11: #{tpu_custom_call.1} parent=5 // pred_region
        %s394 = ssub.s32 %s30, 1
      $region12: #{tpu_custom_call.1} parent=5 // pred_fallthru
        _
      %p395 = scmp.lt.s32.totalorder %s30, 4
      // Predicated region
      $region13: #{tpu_custom_call.1} parent=5 // pred_check
        %p396 = pneg %p395
      $region14: #{tpu_custom_call.1} parent=5 // pred_check_branch
        %398 = sbr.rel (%p396) target = $region16
      $region15: #{tpu_custom_call.1} parent=5 // pred_region
        // Predicated region
        $region17: #{tpu_custom_call.1} parent=15 // pred_check
          %p399 = pneg %p62
        $region18: #{tpu_custom_call.1} parent=15 // pred_check_branch
          %401 = sbr.rel (%p399) target = $region20
        $region19: #{tpu_custom_call.1} parent=15 // pred_region
          %s402 = sand.u32 %s52, 1
          %s403 = scalar_lea.sflag [#allocation3], %s402
          %s404 = sand.u32 %s52, 1
          %s405 = smul.addr %s404, 64
          %s406 = scalar_lea.vmem [#allocation2], %s405
          %s407 = smul.u32 8, %s37
          %s409 = ssub.s32 1024, 1024
          %410 = vsyncadd %s403, %s409
          %s411 = smul.addr %s407, 128
          %s412 = scalar_lea.hbm %s0, %s411
          %s413 = sshll.u32 %s406, 4
          %s414 = int_to_ptr.vmem [resolvable:$true] %s413
          %419 = dma.hbm_to_vmem [thread:$0]  %s412, 1024, %s414, %s403, 128, 128, 8
        $region20: #{tpu_custom_call.1} parent=15 // pred_fallthru
          _
        // Predicated region
        $region21: #{tpu_custom_call.1} parent=15 // pred_check
          %p420 = pneg %p88
        $region22: #{tpu_custom_call.1} parent=15 // pred_check_branch
          %422 = sbr.rel (%p420) target = $region24
        $region23: #{tpu_custom_call.1} parent=15 // pred_region
          %p423 = scmp.lt.s32.totalorder %s38, 1
          %s424 = scalar_select %p423, %s38, 1
          %s425 = scalar_lea.vmem %s1, %s424
        $region24: #{tpu_custom_call.1} parent=15 // pred_fallthru
          _
        // Predicated region
        $region25: #{tpu_custom_call.1} parent=15 // pred_check
          %p426 = pneg %p114
        $region26: #{tpu_custom_call.1} parent=15 // pred_check_branch
          %428 = sbr.rel (%p426) target = $region28
        $region27: #{tpu_custom_call.1} parent=15 // pred_region
          %p429 = scmp.lt.s32.totalorder %s38, 1
          %s430 = scalar_select %p429, %s38, 1
          %s431 = scalar_lea.vmem %s2, %s430
        $region28: #{tpu_custom_call.1} parent=15 // pred_fallthru
          _
        // Predicated region
        $region29: #{tpu_custom_call.1} parent=15 // pred_check
          %p432 = pneg %p140
        $region30: #{tpu_custom_call.1} parent=15 // pred_check_branch
          %434 = sbr.rel (%p432) target = $region32
        $region31: #{tpu_custom_call.1} parent=15 // pred_region
          %s435 = sand.u32 %s30, 1
          %s436 = scalar_lea.sflag [#allocation6], %s435
          %s437 = sand.u32 %s130, 1
          %s438 = smul.addr %s437, 64
          %s439 = scalar_lea.vmem [#allocation5], %s438
          %s441 = ssub.s32 1024, 1024
          %442 = vsyncadd %s436, %s441
          %s443 = smul.addr %s38, 16
          %s444 = smul.addr %s443, 64
          %s445 = scalar_lea.hbm %s3, %s444
          %s446 = sshll.u32 %s439, 4
          %s447 = int_to_ptr.vmem [resolvable:$true] %s446
          %452 = dma.hbm_to_vmem [thread:$0]  %s445, 1024, %s447, %s436, 64, 64, 4
        $region32: #{tpu_custom_call.1} parent=15 // pred_fallthru
          _
        // Predicated region
        $region33: #{tpu_custom_call.1} parent=15 // pred_check
          %p453 = pneg %p166
        $region34: #{tpu_custom_call.1} parent=15 // pred_check_branch
          %455 = sbr.rel (%p453) target = $region36
        $region35: #{tpu_custom_call.1} parent=15 // pred_region
          %s456 = sand.u32 %s30, 1
          %s457 = scalar_lea.sflag [#allocation6], %s456
          %s458 = sand.u32 %s156, 1
          %s459 = smul.addr %s458, 64
          %s460 = scalar_lea.vmem [#allocation7], %s459
          %s462 = ssub.s32 1024, 1024
          %463 = vsyncadd %s457, %s462
          %s464 = smul.addr %s38, 16
          %s465 = smul.addr %s464, 64
          %s466 = scalar_lea.hbm %s4, %s465
          %s467 = sshll.u32 %s460, 4
          %s468 = int_to_ptr.vmem [resolvable:$true] %s467
          %473 = dma.hbm_to_vmem [thread:$0]  %s466, 1024, %s468, %s457, 64, 64, 4
        $region36: #{tpu_custom_call.1} parent=15 // pred_fallthru
          _
        // Predicated region
        $region37: #{tpu_custom_call.1} parent=15 // pred_check
          %p474 = pneg %p192
        $region38: #{tpu_custom_call.1} parent=15 // pred_check_branch
          %476 = sbr.rel (%p474) target = $region40
        $region39: #{tpu_custom_call.1} parent=15 // pred_region
          %p477 = scmp.lt.s32.totalorder %s38, 1
          %s478 = scalar_select %p477, %s38, 1
          %s479 = scalar_lea.vmem %s5, %s478
        $region40: #{tpu_custom_call.1} parent=15 // pred_fallthru
          _
        // Predicated region
        $region41: #{tpu_custom_call.1} parent=15 // pred_check
          %p480 = pneg %p218
        $region42: #{tpu_custom_call.1} parent=15 // pred_check_branch
          %482 = sbr.rel (%p480) target = $region44
        $region43: #{tpu_custom_call.1} parent=15 // pred_region
          %p483 = scmp.lt.s32.totalorder %s38, 1
          %s484 = scalar_select %p483, %s38, 1
          %s485 = scalar_lea.vmem %s6, %s484
        $region44: #{tpu_custom_call.1} parent=15 // pred_fallthru
          _
        // Predicated region
        $region45: #{tpu_custom_call.1} parent=15 // pred_check
          %p486 = pneg %p244
        $region46: #{tpu_custom_call.1} parent=15 // pred_check_branch
          %488 = sbr.rel (%p486) target = $region48
        $region47: #{tpu_custom_call.1} parent=15 // pred_region
          %p489 = scmp.lt.s32.totalorder %s38, 1
          %s490 = scalar_select %p489, %s38, 1
          %s491 = scalar_lea.vmem %s7, %s490
        $region48: #{tpu_custom_call.1} parent=15 // pred_fallthru
          _
        // Predicated region
        $region49: #{tpu_custom_call.1} parent=15 // pred_check
          %p492 = pneg %p270
        $region50: #{tpu_custom_call.1} parent=15 // pred_check_branch
          %494 = sbr.rel (%p492) target = $region52
        $region51: #{tpu_custom_call.1} parent=15 // pred_region
          %s495 = sand.u32 %s30, 1
          %s496 = scalar_lea.sflag [#allocation9], %s495
          %s497 = sand.u32 %s260, 1
          %s498 = smul.addr %s497, 64
          %s499 = scalar_lea.vmem [#allocation8], %s498
          %s501 = ssub.s32 1024, 1024
          %502 = vsyncadd %s496, %s501
          %s503 = smul.addr %s38, 16
          %s504 = smul.addr %s503, 64
          %s505 = scalar_lea.hbm %s8, %s504
          %s506 = sshll.u32 %s499, 4
          %s507 = int_to_ptr.vmem [resolvable:$true] %s506
          %512 = dma.hbm_to_vmem [thread:$0]  %s505, 1024, %s507, %s496, 64, 64, 4
        $region52: #{tpu_custom_call.1} parent=15 // pred_fallthru
          _
        // Predicated region
        $region53: #{tpu_custom_call.1} parent=15 // pred_check
          %p513 = pneg %p296
        $region54: #{tpu_custom_call.1} parent=15 // pred_check_branch
          %515 = sbr.rel (%p513) target = $region56
        $region55: #{tpu_custom_call.1} parent=15 // pred_region
          %p516 = scmp.lt.s32.totalorder %s38, 1
          %s517 = scalar_select %p516, %s38, 1
          %s518 = scalar_lea.vmem %s9, %s517
        $region56: #{tpu_custom_call.1} parent=15 // pred_fallthru
          _
        // Predicated region
        $region57: #{tpu_custom_call.1} parent=15 // pred_check
          %p519 = pneg %p322
        $region58: #{tpu_custom_call.1} parent=15 // pred_check_branch
          %521 = sbr.rel (%p519) target = $region60
        $region59: #{tpu_custom_call.1} parent=15 // pred_region
          %s522 = sand.u32 %s30, 1
          %s523 = scalar_lea.sflag [#allocation9], %s522
          %s524 = sand.u32 %s312, 1
          %s525 = smul.addr %s524, 64
          %s526 = scalar_lea.vmem [#allocation10], %s525
          %s528 = ssub.s32 1024, 1024
          %529 = vsyncadd %s523, %s528
          %s530 = smul.addr %s38, 16
          %s531 = smul.addr %s530, 64
          %s532 = scalar_lea.hbm %s10, %s531
          %s533 = sshll.u32 %s526, 4
          %s534 = int_to_ptr.vmem [resolvable:$true] %s533
          %539 = dma.hbm_to_vmem [thread:$0]  %s532, 1024, %s534, %s523, 64, 64, 4
        $region60: #{tpu_custom_call.1} parent=15 // pred_fallthru
          _
        // Predicated region
        $region61: #{tpu_custom_call.1} parent=15 // pred_check
          %p540 = pneg %p348
        $region62: #{tpu_custom_call.1} parent=15 // pred_check_branch
          %542 = sbr.rel (%p540) target = $region64
        $region63: #{tpu_custom_call.1} parent=15 // pred_region
          %p543 = scmp.lt.s32.totalorder %s38, 1
          %s544 = scalar_select %p543, %s38, 1
          %s545 = scalar_lea.vmem %s11, %s544
        $region64: #{tpu_custom_call.1} parent=15 // pred_fallthru
          _
      $region16: #{tpu_custom_call.1} parent=5 // pred_fallthru
        _
      %p546 = scmp.le.s32.totalorder 1, %s30
      %p547 = scmp.lt.s32.totalorder %s30, 5
      %p548 = pnand %p546, %p547
      %p549 = pneg %p548
      // Predicated region
      $region65: #{tpu_custom_call.1} parent=5 // pred_check
        _
      $region66: #{tpu_custom_call.1} parent=5 // pred_check_branch
        %551 = sbr.rel (%p548) target = $region68
      $region67: #{tpu_custom_call.1} parent=5 // pred_region
        %s552 = ssub.s32 %s30, 1
        %s553 = sand.u32 %s55, 1
        %s554 = scalar_lea.sflag [#allocation3], %s553
        %s555 = sand.u32 %s55, 1
        %s556 = smul.addr %s555, 64
        %s557 = scalar_lea.vmem [#allocation2], %s556
        // Predicated region
        $region69: #{tpu_custom_call.1} parent=67 // pred_check
          %p558 = pneg %p68
        $region70: #{tpu_custom_call.1} parent=67 // pred_check_branch
          %560 = sbr.rel (%p558) target = $region72
        $region71: #{tpu_custom_call.1} parent=67 // pred_region
          %561 = dma.done %s554, 1024
        $region72: #{tpu_custom_call.1} parent=67 // pred_fallthru
          _
        %s562 = sand.u32 %s35, 1
        %s563 = scalar_lea.sflag [#allocation6], %s562
        %s564 = sand.u32 %s133, 1
        %s565 = smul.addr %s564, 64
        %s566 = scalar_lea.vmem [#allocation5], %s565
        // Predicated region
        $region73: #{tpu_custom_call.1} parent=67 // pred_check
          %p567 = pneg %p146
        $region74: #{tpu_custom_call.1} parent=67 // pred_check_branch
          %569 = sbr.rel (%p567) target = $region76
        $region75: #{tpu_custom_call.1} parent=67 // pred_region
          %570 = dma.done %s563, 1024
        $region76: #{tpu_custom_call.1} parent=67 // pred_fallthru
          _
        %s571 = sand.u32 %s35, 1
        %s572 = scalar_lea.sflag [#allocation6], %s571
        %s573 = sand.u32 %s159, 1
        %s574 = smul.addr %s573, 64
        %s575 = scalar_lea.vmem [#allocation7], %s574
        // Predicated region
        $region77: #{tpu_custom_call.1} parent=67 // pred_check
          %p576 = pneg %p172
        $region78: #{tpu_custom_call.1} parent=67 // pred_check_branch
          %578 = sbr.rel (%p576) target = $region80
        $region79: #{tpu_custom_call.1} parent=67 // pred_region
          %579 = dma.done %s572, 1024
        $region80: #{tpu_custom_call.1} parent=67 // pred_fallthru
          _
        %s580 = sand.u32 %s35, 1
        %s581 = scalar_lea.sflag [#allocation9], %s580
        %s582 = sand.u32 %s263, 1
        %s583 = smul.addr %s582, 64
        %s584 = scalar_lea.vmem [#allocation8], %s583
        // Predicated region
        $region81: #{tpu_custom_call.1} parent=67 // pred_check
          %p585 = pneg %p276
        $region82: #{tpu_custom_call.1} parent=67 // pred_check_branch
          %587 = sbr.rel (%p585) target = $region84
        $region83: #{tpu_custom_call.1} parent=67 // pred_region
          %588 = dma.done %s581, 1024
        $region84: #{tpu_custom_call.1} parent=67 // pred_fallthru
          _
        %s589 = sand.u32 %s35, 1
        %s590 = scalar_lea.sflag [#allocation9], %s589
        %s591 = sand.u32 %s315, 1
        %s592 = smul.addr %s591, 64
        %s593 = scalar_lea.vmem [#allocation10], %s592
        // Predicated region
        $region85: #{tpu_custom_call.1} parent=67 // pred_check
          %p594 = pneg %p328
        $region86: #{tpu_custom_call.1} parent=67 // pred_check_branch
          %596 = sbr.rel (%p594) target = $region88
        $region87: #{tpu_custom_call.1} parent=67 // pred_region
          %597 = dma.done %s590, 1024
        $region88: #{tpu_custom_call.1} parent=67 // pred_fallthru
          _
        %s598 = sand.u32 %s55, 1
        %s599 = scalar_lea.sflag [#allocation3], %s598
        %s600 = sand.u32 %s55, 1
        %s601 = smul.addr %s600, 64
        %s602 = scalar_lea.vmem [#allocation2], %s601
        %p603 = pneg %p68
        %p604 = pneg %p65
        %p605 = scmp.lt.s32.totalorder %s40, 1
        %s606 = scalar_select %p605, %s40, 1
        %s607 = scalar_lea.vmem %s1, %s606
        %p608 = pneg %p94
        %p609 = pneg %p91
        %p610 = scmp.lt.s32.totalorder %s40, 1
        %s611 = scalar_select %p610, %s40, 1
        %s612 = scalar_lea.vmem %s2, %s611
        %p613 = pneg %p120
        %p614 = pneg %p117
        %s615 = sand.u32 %s35, 1
        %s616 = scalar_lea.sflag [#allocation6], %s615
        %s617 = sand.u32 %s133, 1
        %s618 = smul.addr %s617, 64
        %s619 = scalar_lea.vmem [#allocation5], %s618
        %p620 = pneg %p146
        %p621 = pneg %p143
        %s622 = sand.u32 %s35, 1
        %s623 = scalar_lea.sflag [#allocation6], %s622
        %s624 = sand.u32 %s159, 1
        %s625 = smul.addr %s624, 64
        %s626 = scalar_lea.vmem [#allocation7], %s625
        %p627 = pneg %p172
        %p628 = pneg %p169
        %p629 = scmp.lt.s32.totalorder %s40, 1
        %s630 = scalar_select %p629, %s40, 1
        %s631 = scalar_lea.vmem %s5, %s630
        %p632 = pneg %p198
        %p633 = pneg %p195
        %p634 = scmp.lt.s32.totalorder %s40, 1
        %s635 = scalar_select %p634, %s40, 1
        %s636 = scalar_lea.vmem %s6, %s635
        %p637 = pneg %p224
        %p638 = pneg %p221
        %p639 = scmp.lt.s32.totalorder %s40, 1
        %s640 = scalar_select %p639, %s40, 1
        %s641 = scalar_lea.vmem %s7, %s640
        %p642 = pneg %p250
        %p643 = pneg %p247
        %s644 = sand.u32 %s35, 1
        %s645 = scalar_lea.sflag [#allocation9], %s644
        %s646 = sand.u32 %s263, 1
        %s647 = smul.addr %s646, 64
        %s648 = scalar_lea.vmem [#allocation8], %s647
        %p649 = pneg %p276
        %p650 = pneg %p273
        %p651 = scmp.lt.s32.totalorder %s40, 1
        %s652 = scalar_select %p651, %s40, 1
        %s653 = scalar_lea.vmem %s9, %s652
        %p654 = pneg %p302
        %p655 = pneg %p299
        %s656 = sand.u32 %s35, 1
        %s657 = scalar_lea.sflag [#allocation9], %s656
        %s658 = sand.u32 %s315, 1
        %s659 = smul.addr %s658, 64
        %s660 = scalar_lea.vmem [#allocation10], %s659
        %p661 = pneg %p328
        %p662 = pneg %p325
        %p663 = scmp.lt.s32.totalorder %s40, 1
        %s664 = scalar_select %p663, %s40, 1
        %s665 = scalar_lea.vmem %s11, %s664
        %p666 = pneg %p354
        %p667 = pneg %p351
        %p668 = pneg %p380
        %p669 = pneg %p377
        %s670 = sand.u32 %s367, 1
        %s671 = scalar_lea.sflag [#allocation4], %s670
        %s672 = sand.u32 %s367, 1
        %s673 = smul.addr %s672, 64
        %s674 = scalar_lea.vmem [#allocation11], %s673
        %s675 = smul.u32 8, %s39
        %p676 = scmp.lt.s32.totalorder %s40, 1
        %s677 = scalar_select %p676, %s40, 1
        %s678 = scalar_lea.vmem %s1, %s677
        %p679 = scmp.lt.s32.totalorder %s40, 1
        %s680 = scalar_select %p679, %s40, 1
        %s681 = scalar_lea.vmem %s2, %s680
        %p682 = scmp.lt.s32.totalorder %s40, 1
        %s683 = scalar_select %p682, %s40, 1
        %s684 = scalar_lea.vmem %s5, %s683
        %p685 = scmp.lt.s32.totalorder %s40, 1
        %s686 = scalar_select %p685, %s40, 1
        %s687 = scalar_lea.vmem %s6, %s686
        %p688 = scmp.lt.s32.totalorder %s40, 1
        %s689 = scalar_select %p688, %s40, 1
        %s690 = scalar_lea.vmem %s7, %s689
        %p691 = scmp.lt.s32.totalorder %s40, 1
        %s692 = scalar_select %p691, %s40, 1
        %s693 = scalar_lea.vmem %s9, %s692
        %p694 = scmp.lt.s32.totalorder %s40, 1
        %s695 = scalar_select %p694, %s40, 1
        %s696 = scalar_lea.vmem %s11, %s695
        %s697 = smul.u32 8, %s39
        %p699 = scmp.eq.s32.totalorder %s40, 0
        // Predicated region
        $region89: #{tpu_custom_call.1} parent=67 // pred_check
          %p700 = pneg %p699
        $region90: #{tpu_custom_call.1} parent=67 // pred_check_branch
          %702 = sbr.rel (%p700) target = $region92
        $region91: #{tpu_custom_call.1} parent=67 // pred_region
          %v703 = vld [vmem:[%s557] sm:$0xff]
          %v704 = vld [vmem:[%s557 + $0x8] sm:$0xff]
          %v705 = vld [vmem:[%s557 + $0x10] sm:$0xff]
          %v706 = vld [vmem:[%s557 + $0x18] sm:$0xff]
          %v707 = vld [vmem:[%s557 + $0x20] sm:$0xff]
          %v708 = vld [vmem:[%s557 + $0x28] sm:$0xff]
          %v709 = vld [vmem:[%s557 + $0x30] sm:$0xff]
          %v710 = vld [vmem:[%s557 + $0x38] sm:$0xff]
          %711 = vst [vmem:[%s674] sm:$0xff] %v703
          %712 = vst [vmem:[%s674 + $0x8] sm:$0xff] %v704
          %713 = vst [vmem:[%s674 + $0x10] sm:$0xff] %v705
          %714 = vst [vmem:[%s674 + $0x18] sm:$0xff] %v706
          %715 = vst [vmem:[%s674 + $0x20] sm:$0xff] %v707
          %716 = vst [vmem:[%s674 + $0x28] sm:$0xff] %v708
          %717 = vst [vmem:[%s674 + $0x30] sm:$0xff] %v709
          %718 = vst [vmem:[%s674 + $0x38] sm:$0xff] %v710
        $region92: #{tpu_custom_call.1} parent=67 // pred_fallthru
          _
        %v719 = vld [vmem:[%s674] sm:$0xff]
        %v720 = vld [vmem:[%s674 + $0x8] sm:$0xff]
        %v721 = vld [vmem:[%s674 + $0x10] sm:$0xff]
        %v722 = vld [vmem:[%s674 + $0x18] sm:$0xff]
        %v723 = vld [vmem:[%s674 + $0x20] sm:$0xff]
        %v724 = vld [vmem:[%s674 + $0x28] sm:$0xff]
        %v725 = vld [vmem:[%s674 + $0x30] sm:$0xff]
        %v726 = vld [vmem:[%s674 + $0x38] sm:$0xff]
        %v727 = vlaneseq
        %v728 = vand.u32 %v727, 127
        %vm729 = vcmp.lt.s32.totalorder %v728, 32
        %v730 = vsel %vm729, 1, 0
        %v731 = vcvt.s32.f32 %v730
        %v732 = vld [vmem:[%s678] sm:$0x1]
        %v733 = vld [vmem:[%s681] sm:$0x1]
        %734 = vadd.xlane.f32.xlu0 %v719
        %v735 = vpop.xlane.xlu0 %734
        %736 = vadd.xlane.f32.xlu0 %v720
        %v737 = vpop.xlane.xlu0 %736
        %738 = vadd.xlane.f32.xlu0 %v721
        %v739 = vpop.xlane.xlu0 %738
        %740 = vadd.xlane.f32.xlu0 %v722
        %v741 = vpop.xlane.xlu0 %740
        %742 = vadd.xlane.f32.xlu0 %v723
        %v743 = vpop.xlane.xlu0 %742
        %744 = vadd.xlane.f32.xlu0 %v724
        %v745 = vpop.xlane.xlu0 %744
        %746 = vadd.xlane.f32.xlu0 %v725
        %v747 = vpop.xlane.xlu0 %746
        %748 = vadd.xlane.f32.xlu0 %v726
        %v749 = vpop.xlane.xlu0 %748
        %v750 = vmul.f32 %v735, 0.03125
        %v751 = vmul.f32 %v737, 0.03125
        %v752 = vmul.f32 %v739, 0.03125
        %v753 = vmul.f32 %v741, 0.03125
        %v754 = vmul.f32 %v743, 0.03125
        %v755 = vmul.f32 %v745, 0.03125
        %v756 = vmul.f32 %v747, 0.03125
        %v757 = vmul.f32 %v749, 0.03125
        %v758 = vsub.f32 %v719, %v750
        %v759 = vsub.f32 %v720, %v751
        %v760 = vsub.f32 %v721, %v752
        %v761 = vsub.f32 %v722, %v753
        %v762 = vsub.f32 %v723, %v754
        %v763 = vsub.f32 %v724, %v755
        %v764 = vsub.f32 %v725, %v756
        %v765 = vsub.f32 %v726, %v757
        %v766 = vmul.f32 %v758, %v731
        %v767 = vmul.f32 %v759, %v731
        %v768 = vmul.f32 %v760, %v731
        %v769 = vmul.f32 %v761, %v731
        %v770 = vmul.f32 %v762, %v731
        %v771 = vmul.f32 %v763, %v731
        %v772 = vmul.f32 %v764, %v731
        %v773 = vmul.f32 %v765, %v731
        %v774 = vmul.f32 %v766, %v766
        %v775 = vmul.f32 %v767, %v767
        %v776 = vmul.f32 %v768, %v768
        %v777 = vmul.f32 %v769, %v769
        %v778 = vmul.f32 %v770, %v770
        %v779 = vmul.f32 %v771, %v771
        %v780 = vmul.f32 %v772, %v772
        %v781 = vmul.f32 %v773, %v773
        %782 = vadd.xlane.f32.xlu0 %v774
        %v783 = vpop.xlane.xlu0 %782
        %784 = vadd.xlane.f32.xlu0 %v775
        %v785 = vpop.xlane.xlu0 %784
        %786 = vadd.xlane.f32.xlu0 %v776
        %v787 = vpop.xlane.xlu0 %786
        %788 = vadd.xlane.f32.xlu0 %v777
        %v789 = vpop.xlane.xlu0 %788
        %790 = vadd.xlane.f32.xlu0 %v778
        %v791 = vpop.xlane.xlu0 %790
        %792 = vadd.xlane.f32.xlu0 %v779
        %v793 = vpop.xlane.xlu0 %792
        %794 = vadd.xlane.f32.xlu0 %v780
        %v795 = vpop.xlane.xlu0 %794
        %796 = vadd.xlane.f32.xlu0 %v781
        %v797 = vpop.xlane.xlu0 %796
        %v798 = vmul.f32 %v783, 0.03125
        %v799 = vmul.f32 %v785, 0.03125
        %v800 = vmul.f32 %v787, 0.03125
        %v801 = vmul.f32 %v789, 0.03125
        %v802 = vmul.f32 %v791, 0.03125
        %v803 = vmul.f32 %v793, 0.03125
        %v804 = vmul.f32 %v795, 0.03125
        %v805 = vmul.f32 %v797, 0.03125
        %v806 = vadd.f32 %v798, 1e-05
        %v807 = vadd.f32 %v799, 1e-05
        %v808 = vadd.f32 %v800, 1e-05
        %v809 = vadd.f32 %v801, 1e-05
        %v810 = vadd.f32 %v802, 1e-05
        %v811 = vadd.f32 %v803, 1e-05
        %v812 = vadd.f32 %v804, 1e-05
        %v813 = vadd.f32 %v805, 1e-05
        %v814 = vrsqrt.pop %v806
        %v815 = vrsqrt.pop %v807
        %v816 = vrsqrt.pop %v808
        %v817 = vrsqrt.pop %v809
        %v818 = vrsqrt.pop %v810
        %v819 = vrsqrt.pop %v811
        %v820 = vrsqrt.pop %v812
        %v821 = vrsqrt.pop %v813
        %v822 = vmul.f32 %v766, %v814
        %v823 = vmul.f32 %v767, %v815
        %v824 = vmul.f32 %v768, %v816
        %v825 = vmul.f32 %v769, %v817
        %v826 = vmul.f32 %v770, %v818
        %v827 = vmul.f32 %v771, %v819
        %v828 = vmul.f32 %v772, %v820
        %v829 = vmul.f32 %v773, %v821
        %v831 = vlaneseq
        %v832 = vshrl.u32 %v831, 7
        %v833 = vsub.s32 0, %v832
        %v834 = vrot.slane %v732, %v833
        %v836 = vmul.f32 %v822, %v834
        %v837 = vmul.f32 %v823, %v834
        %v838 = vmul.f32 %v824, %v834
        %v839 = vmul.f32 %v825, %v834
        %v840 = vmul.f32 %v826, %v834
        %v841 = vmul.f32 %v827, %v834
        %v842 = vmul.f32 %v828, %v834
        %v843 = vmul.f32 %v829, %v834
        %v845 = vlaneseq
        %v846 = vshrl.u32 %v845, 7
        %v847 = vsub.s32 0, %v846
        %v848 = vrot.slane %v733, %v847
        %v850 = vadd.f32 %v836, %v848
        %v851 = vadd.f32 %v837, %v848
        %v852 = vadd.f32 %v838, %v848
        %v853 = vadd.f32 %v839, %v848
        %v854 = vadd.f32 %v840, %v848
        %v855 = vadd.f32 %v841, %v848
        %v856 = vadd.f32 %v842, %v848
        %v857 = vadd.f32 %v843, %v848
        %v858 = vpack.c.bf16 %v851, %v850
        %v859 = vpack.c.bf16 %v853, %v852
        %v860 = vpack.c.bf16 %v855, %v854
        %v861 = vpack.c.bf16 %v857, %v856
        %v862 = vld [vmem:[%s566] sm:$0xf]
        %v863 = vld [vmem:[%s566 + $0x4] sm:$0xf]
        %v864 = vld [vmem:[%s566 + $0x8] sm:$0xf]
        %v865 = vld [vmem:[%s566 + $0xc] sm:$0xf]
        %v866 = vld [vmem:[%s566 + $0x10] sm:$0xf]
        %v867 = vld [vmem:[%s566 + $0x14] sm:$0xf]
        %v868 = vld [vmem:[%s566 + $0x18] sm:$0xf]
        %v869 = vld [vmem:[%s566 + $0x1c] sm:$0xf]
        %v870 = vld [vmem:[%s566 + $0x20] sm:$0xf]
        %v871 = vld [vmem:[%s566 + $0x24] sm:$0xf]
        %v872 = vld [vmem:[%s566 + $0x28] sm:$0xf]
        %v873 = vld [vmem:[%s566 + $0x2c] sm:$0xf]
        %v874 = vld [vmem:[%s566 + $0x30] sm:$0xf]
        %v875 = vld [vmem:[%s566 + $0x34] sm:$0xf]
        %v876 = vld [vmem:[%s566 + $0x38] sm:$0xf]
        %v877 = vld [vmem:[%s566 + $0x3c] sm:$0xf]
        %v894 = vunpack.c.l.b16 %v862
        %v895 = vunpack.c.l.b16 %v863
        %v896 = vunpack.c.l.b16 %v864
        %v897 = vunpack.c.l.b16 %v865
        %v898 = vunpack.c.l.b16 %v866
        %v899 = vunpack.c.l.b16 %v867
        %v900 = vunpack.c.l.b16 %v868
        %v901 = vunpack.c.l.b16 %v869
        %v902 = vunpack.c.l.b16 %v870
        %v903 = vunpack.c.l.b16 %v871
        %v904 = vunpack.c.l.b16 %v872
        %v905 = vunpack.c.l.b16 %v873
        %v906 = vunpack.c.l.b16 %v874
        %v907 = vunpack.c.l.b16 %v875
        %v908 = vunpack.c.l.b16 %v876
        %v909 = vunpack.c.l.b16 %v877
        %v910 = vpack.c.b16 %v895, %v894
        %v911 = vpack.c.b16 %v897, %v896
        %v912 = vpack.c.b16 %v899, %v898
        %v913 = vpack.c.b16 %v901, %v900
        %v914 = vpack.c.b16 %v903, %v902
        %v915 = vpack.c.b16 %v905, %v904
        %v916 = vpack.c.b16 %v907, %v906
        %v917 = vpack.c.b16 %v909, %v908
        %926 = vmatprep.subr.bf16.mxu0 0
        %927 = vmatpush1.bf16.msra.mxu0 %v910
        %928 = vmatprep.subr.bf16.mxu0 0
        %929 = vmatpush1.bf16.msra.mxu0 %v911
        %930 = vmatprep.subr.bf16.mxu0 0
        %931 = vmatpush1.bf16.msra.mxu0 %v912
        %932 = vmatprep.subr.bf16.mxu0 0
        %933 = vmatpush1.bf16.msra.mxu0 %v913
        %934 = vmatprep.subr.bf16.mxu0 0
        %935 = vmatpush1.bf16.msra.mxu0 %v914
        %936 = vmatprep.subr.bf16.mxu0 0
        %937 = vmatpush1.bf16.msra.mxu0 %v915
        %938 = vmatprep.subr.bf16.mxu0 0
        %939 = vmatpush1.bf16.msra.mxu0 %v916
        %940 = vmatprep.subr.bf16.mxu0 0
        %941 = vmatpush1.bf16.msra.mxu0 %v917
        %942 = vmatprep.subr.bf16.mxu0 0
        %943 = vmatpush1.bf16.msra.mxu0 0
        %944 = vmatprep.subr.bf16.mxu0 0
        %945 = vmatpush1.bf16.msra.mxu0 0
        %946 = vmatprep.subr.bf16.mxu0 0
        %947 = vmatpush1.bf16.msra.mxu0 0
        %948 = vmatprep.subr.bf16.mxu0 0
        %949 = vmatpush1.bf16.msra.mxu0 0
        %950 = vmatprep.subr.bf16.mxu0 0
        %951 = vmatpush1.bf16.msra.mxu0 0
        %952 = vmatprep.subr.bf16.mxu0 0
        %953 = vmatpush1.bf16.msra.mxu0 0
        %954 = vmatprep.subr.bf16.mxu0 0
        %955 = vmatpush1.bf16.msra.mxu0 0
        %956 = vmatprep.subr.bf16.mxu0 0
        %957 = vmatpush1.bf16.msra.mxu0 0
        %958 = vmatprep.mubr.bf16.mxu0 0
        %959 = vmatmul.mubr.bf16.gmra.mrb[0].mxu0 %v858
        %v960 = vpop.f32.mrb[0].mxu0
        %v961 = vadd.f32 0.0, %v960
        %v962 = vpop.f32.mrb[0].mxu0
        %v963 = vpop.f32.mrb[0].mxu0
        %v964 = vadd.f32 0.0, %v963
        %v965 = vpop.f32.mrb[0].mxu0
        %966 = vmatprep.mubr.bf16.mxu0 0
        %967 = vmatmul.mubr.bf16.gmra.mrb[0].mxu0 %v859
        %v968 = vpop.f32.mrb[0].mxu0
        %v969 = vadd.f32 0.0, %v968
        %v970 = vpop.f32.mrb[0].mxu0
        %v971 = vpop.f32.mrb[0].mxu0
        %v972 = vadd.f32 0.0, %v971
        %v973 = vpop.f32.mrb[0].mxu0
        %974 = vmatprep.mubr.bf16.mxu0 0
        %975 = vmatmul.mubr.bf16.gmra.mrb[0].mxu0 %v860
        %v976 = vpop.f32.mrb[0].mxu0
        %v977 = vadd.f32 0.0, %v976
        %v978 = vpop.f32.mrb[0].mxu0
        %v979 = vpop.f32.mrb[0].mxu0
        %v980 = vadd.f32 0.0, %v979
        %v981 = vpop.f32.mrb[0].mxu0
        %982 = vmatprep.mubr.bf16.mxu0 0
        %983 = vmatmul.mubr.bf16.gmra.mrb[0].mxu0 %v861
        %v984 = vpop.f32.mrb[0].mxu0
        %v985 = vadd.f32 0.0, %v984
        %v986 = vpop.f32.mrb[0].mxu0
        %v987 = vpop.f32.mrb[0].mxu0
        %v988 = vadd.f32 0.0, %v987
        %v989 = vpop.f32.mrb[0].mxu0
        %990 = vdwg.mxu0
        %v991 = vadd.f32 %v961, %v964
        %v992 = vadd.f32 %v991, %v969
        %v993 = vadd.f32 %v992, %v972
        %v994 = vadd.f32 %v993, %v977
        %v995 = vadd.f32 %v994, %v980
        %v996 = vadd.f32 %v995, %v985
        %v997 = vadd.f32 %v996, %v988
        %v998 = vrot.slane %v997, 4
        %v999 = vadd.f32 %v997, %v998
        %v1000 = vrot.slane %v999, 2
        %v1001 = vadd.f32 %v999, %v1000
        %v1002 = vrot.slane %v1001, 1
        %v1003 = vadd.f32 %v1001, %v1002
        %v1004 = vmul.f32 %v1003, 0.015625
        %v1005 = vpack.c.bf16 %v1004, %v1004
        %v1006 = vld [vmem:[%s575] sm:$0xf]
        %v1007 = vld [vmem:[%s575 + $0x4] sm:$0xf]
        %v1008 = vld [vmem:[%s575 + $0x8] sm:$0xf]
        %v1009 = vld [vmem:[%s575 + $0xc] sm:$0xf]
        %v1010 = vld [vmem:[%s575 + $0x10] sm:$0xf]
        %v1011 = vld [vmem:[%s575 + $0x14] sm:$0xf]
        %v1012 = vld [vmem:[%s575 + $0x18] sm:$0xf]
        %v1013 = vld [vmem:[%s575 + $0x1c] sm:$0xf]
        %v1014 = vld [vmem:[%s575 + $0x20] sm:$0xf]
        %v1015 = vld [vmem:[%s575 + $0x24] sm:$0xf]
        %v1016 = vld [vmem:[%s575 + $0x28] sm:$0xf]
        %v1017 = vld [vmem:[%s575 + $0x2c] sm:$0xf]
        %v1018 = vld [vmem:[%s575 + $0x30] sm:$0xf]
        %v1019 = vld [vmem:[%s575 + $0x34] sm:$0xf]
        %v1020 = vld [vmem:[%s575 + $0x38] sm:$0xf]
        %v1021 = vld [vmem:[%s575 + $0x3c] sm:$0xf]
        %v1022 = vld [vmem:[%s684] sm:$0x1]
        %v1039 = vunpack.c.l.b16 %v1006
        %v1040 = vunpack.c.l.b16 %v1007
        %v1041 = vunpack.c.l.b16 %v1008
        %v1042 = vunpack.c.l.b16 %v1009
        %v1043 = vunpack.c.l.b16 %v1010
        %v1044 = vunpack.c.l.b16 %v1011
        %v1045 = vunpack.c.l.b16 %v1012
        %v1046 = vunpack.c.l.b16 %v1013
        %v1047 = vunpack.c.l.b16 %v1014
        %v1048 = vunpack.c.l.b16 %v1015
        %v1049 = vunpack.c.l.b16 %v1016
        %v1050 = vunpack.c.l.b16 %v1017
        %v1051 = vunpack.c.l.b16 %v1018
        %v1052 = vunpack.c.l.b16 %v1019
        %v1053 = vunpack.c.l.b16 %v1020
        %v1054 = vunpack.c.l.b16 %v1021
        %v1055 = vpack.c.b16 %v1040, %v1039
        %v1056 = vpack.c.b16 %v1042, %v1041
        %v1057 = vpack.c.b16 %v1044, %v1043
        %v1058 = vpack.c.b16 %v1046, %v1045
        %v1059 = vpack.c.b16 %v1048, %v1047
        %v1060 = vpack.c.b16 %v1050, %v1049
        %v1061 = vpack.c.b16 %v1052, %v1051
        %v1062 = vpack.c.b16 %v1054, %v1053
        %1071 = vmatprep.subr.bf16.mxu0 0
        %1072 = vmatpush1.bf16.msra.mxu0 %v1055
        %1073 = vmatprep.subr.bf16.mxu0 0
        %1074 = vmatpush1.bf16.msra.mxu0 %v1056
        %1075 = vmatprep.subr.bf16.mxu0 0
        %1076 = vmatpush1.bf16.msra.mxu0 %v1057
        %1077 = vmatprep.subr.bf16.mxu0 0
        %1078 = vmatpush1.bf16.msra.mxu0 %v1058
        %1079 = vmatprep.subr.bf16.mxu0 0
        %1080 = vmatpush1.bf16.msra.mxu0 %v1059
        %1081 = vmatprep.subr.bf16.mxu0 0
        %1082 = vmatpush1.bf16.msra.mxu0 %v1060
        %1083 = vmatprep.subr.bf16.mxu0 0
        %1084 = vmatpush1.bf16.msra.mxu0 %v1061
        %1085 = vmatprep.subr.bf16.mxu0 0
        %1086 = vmatpush1.bf16.msra.mxu0 %v1062
        %1087 = vmatprep.subr.bf16.mxu0 0
        %1088 = vmatpush1.bf16.msra.mxu0 0
        %1089 = vmatprep.subr.bf16.mxu0 0
        %1090 = vmatpush1.bf16.msra.mxu0 0
        %1091 = vmatprep.subr.bf16.mxu0 0
        %1092 = vmatpush1.bf16.msra.mxu0 0
        %1093 = vmatprep.subr.bf16.mxu0 0
        %1094 = vmatpush1.bf16.msra.mxu0 0
        %1095 = vmatprep.subr.bf16.mxu0 0
        %1096 = vmatpush1.bf16.msra.mxu0 0
        %1097 = vmatprep.subr.bf16.mxu0 0
        %1098 = vmatpush1.bf16.msra.mxu0 0
        %1099 = vmatprep.subr.bf16.mxu0 0
        %1100 = vmatpush1.bf16.msra.mxu0 0
        %1101 = vmatprep.subr.bf16.mxu0 0
        %1102 = vmatpush1.bf16.msra.mxu0 0
        %1103 = vmatprep.mubr.bf16.mxu0 0
        %1104 = vmatmul.mubr.bf16.gmra.mrb[0].mxu0 %v1005
        %v1105 = vpop.f32.mrb[0].mxu0
        %v1106 = vadd.f32 %v1022, %v1105
        %v1107 = vpop.f32.mrb[0].mxu0
        %v1108 = vpop.f32.mrb[0].mxu0
        %v1109 = vpop.f32.mrb[0].mxu0
        %1110 = vdwg.mxu0
        %v1111 = vlaneseq
        %v1112 = vshrl.u32 %v1111, 7
        %v1113 = vsub.s32 0, %v1112
        %v1114 = vrot.slane %v1106, %v1113
        %v1115 = vadd.f32 %v719, %v1114
        %v1116 = vadd.f32 %v720, %v1114
        %v1117 = vadd.f32 %v721, %v1114
        %v1118 = vadd.f32 %v722, %v1114
        %v1119 = vadd.f32 %v723, %v1114
        %v1120 = vadd.f32 %v724, %v1114
        %v1121 = vadd.f32 %v725, %v1114
        %v1122 = vadd.f32 %v726, %v1114
        %v1123 = vld [vmem:[%s687] sm:$0x1]
        %v1124 = vld [vmem:[%s690] sm:$0x1]
        %1125 = vadd.xlane.f32.xlu0 %v1115
        %v1126 = vpop.xlane.xlu0 %1125
        %1127 = vadd.xlane.f32.xlu0 %v1116
        %v1128 = vpop.xlane.xlu0 %1127
        %1129 = vadd.xlane.f32.xlu0 %v1117
        %v1130 = vpop.xlane.xlu0 %1129
        %1131 = vadd.xlane.f32.xlu0 %v1118
        %v1132 = vpop.xlane.xlu0 %1131
        %1133 = vadd.xlane.f32.xlu0 %v1119
        %v1134 = vpop.xlane.xlu0 %1133
        %1135 = vadd.xlane.f32.xlu0 %v1120
        %v1136 = vpop.xlane.xlu0 %1135
        %1137 = vadd.xlane.f32.xlu0 %v1121
        %v1138 = vpop.xlane.xlu0 %1137
        %1139 = vadd.xlane.f32.xlu0 %v1122
        %v1140 = vpop.xlane.xlu0 %1139
        %v1141 = vmul.f32 %v1126, 0.03125
        %v1142 = vmul.f32 %v1128, 0.03125
        %v1143 = vmul.f32 %v1130, 0.03125
        %v1144 = vmul.f32 %v1132, 0.03125
        %v1145 = vmul.f32 %v1134, 0.03125
        %v1146 = vmul.f32 %v1136, 0.03125
        %v1147 = vmul.f32 %v1138, 0.03125
        %v1148 = vmul.f32 %v1140, 0.03125
        %v1149 = vsub.f32 %v1115, %v1141
        %v1150 = vsub.f32 %v1116, %v1142
        %v1151 = vsub.f32 %v1117, %v1143
        %v1152 = vsub.f32 %v1118, %v1144
        %v1153 = vsub.f32 %v1119, %v1145
        %v1154 = vsub.f32 %v1120, %v1146
        %v1155 = vsub.f32 %v1121, %v1147
        %v1156 = vsub.f32 %v1122, %v1148
        %v1157 = vmul.f32 %v1149, %v731
        %v1158 = vmul.f32 %v1150, %v731
        %v1159 = vmul.f32 %v1151, %v731
        %v1160 = vmul.f32 %v1152, %v731
        %v1161 = vmul.f32 %v1153, %v731
        %v1162 = vmul.f32 %v1154, %v731
        %v1163 = vmul.f32 %v1155, %v731
        %v1164 = vmul.f32 %v1156, %v731
        %v1165 = vmul.f32 %v1157, %v1157
        %v1166 = vmul.f32 %v1158, %v1158
        %v1167 = vmul.f32 %v1159, %v1159
        %v1168 = vmul.f32 %v1160, %v1160
        %v1169 = vmul.f32 %v1161, %v1161
        %v1170 = vmul.f32 %v1162, %v1162
        %v1171 = vmul.f32 %v1163, %v1163
        %v1172 = vmul.f32 %v1164, %v1164
        %1173 = vadd.xlane.f32.xlu0 %v1165
        %v1174 = vpop.xlane.xlu0 %1173
        %1175 = vadd.xlane.f32.xlu0 %v1166
        %v1176 = vpop.xlane.xlu0 %1175
        %1177 = vadd.xlane.f32.xlu0 %v1167
        %v1178 = vpop.xlane.xlu0 %1177
        %1179 = vadd.xlane.f32.xlu0 %v1168
        %v1180 = vpop.xlane.xlu0 %1179
        %1181 = vadd.xlane.f32.xlu0 %v1169
        %v1182 = vpop.xlane.xlu0 %1181
        %1183 = vadd.xlane.f32.xlu0 %v1170
        %v1184 = vpop.xlane.xlu0 %1183
        %1185 = vadd.xlane.f32.xlu0 %v1171
        %v1186 = vpop.xlane.xlu0 %1185
        %1187 = vadd.xlane.f32.xlu0 %v1172
        %v1188 = vpop.xlane.xlu0 %1187
        %v1189 = vmul.f32 %v1174, 0.03125
        %v1190 = vmul.f32 %v1176, 0.03125
        %v1191 = vmul.f32 %v1178, 0.03125
        %v1192 = vmul.f32 %v1180, 0.03125
        %v1193 = vmul.f32 %v1182, 0.03125
        %v1194 = vmul.f32 %v1184, 0.03125
        %v1195 = vmul.f32 %v1186, 0.03125
        %v1196 = vmul.f32 %v1188, 0.03125
        %v1197 = vadd.f32 %v1189, 1e-05
        %v1198 = vadd.f32 %v1190, 1e-05
        %v1199 = vadd.f32 %v1191, 1e-05
        %v1200 = vadd.f32 %v1192, 1e-05
        %v1201 = vadd.f32 %v1193, 1e-05
        %v1202 = vadd.f32 %v1194, 1e-05
        %v1203 = vadd.f32 %v1195, 1e-05
        %v1204 = vadd.f32 %v1196, 1e-05
        %v1205 = vrsqrt.pop %v1197
        %v1206 = vrsqrt.pop %v1198
        %v1207 = vrsqrt.pop %v1199
        %v1208 = vrsqrt.pop %v1200
        %v1209 = vrsqrt.pop %v1201
        %v1210 = vrsqrt.pop %v1202
        %v1211 = vrsqrt.pop %v1203
        %v1212 = vrsqrt.pop %v1204
        %v1213 = vmul.f32 %v1157, %v1205
        %v1214 = vmul.f32 %v1158, %v1206
        %v1215 = vmul.f32 %v1159, %v1207
        %v1216 = vmul.f32 %v1160, %v1208
        %v1217 = vmul.f32 %v1161, %v1209
        %v1218 = vmul.f32 %v1162, %v1210
        %v1219 = vmul.f32 %v1163, %v1211
        %v1220 = vmul.f32 %v1164, %v1212
        %v1222 = vlaneseq
        %v1223 = vshrl.u32 %v1222, 7
        %v1224 = vsub.s32 0, %v1223
        %v1225 = vrot.slane %v1123, %v1224
        %v1227 = vmul.f32 %v1213, %v1225
        %v1228 = vmul.f32 %v1214, %v1225
        %v1229 = vmul.f32 %v1215, %v1225
        %v1230 = vmul.f32 %v1216, %v1225
        %v1231 = vmul.f32 %v1217, %v1225
        %v1232 = vmul.f32 %v1218, %v1225
        %v1233 = vmul.f32 %v1219, %v1225
        %v1234 = vmul.f32 %v1220, %v1225
        %v1236 = vlaneseq
        %v1237 = vshrl.u32 %v1236, 7
        %v1238 = vsub.s32 0, %v1237
        %v1239 = vrot.slane %v1124, %v1238
        %v1241 = vadd.f32 %v1227, %v1239
        %v1242 = vadd.f32 %v1228, %v1239
        %v1243 = vadd.f32 %v1229, %v1239
        %v1244 = vadd.f32 %v1230, %v1239
        %v1245 = vadd.f32 %v1231, %v1239
        %v1246 = vadd.f32 %v1232, %v1239
        %v1247 = vadd.f32 %v1233, %v1239
        %v1248 = vadd.f32 %v1234, %v1239
        %v1249 = vpack.c.bf16 %v1242, %v1241
        %v1250 = vpack.c.bf16 %v1244, %v1243
        %v1251 = vpack.c.bf16 %v1246, %v1245
        %v1252 = vpack.c.bf16 %v1248, %v1247
        %v1253 = vld [vmem:[%s584] sm:$0xf]
        %v1254 = vld [vmem:[%s584 + $0x4] sm:$0xf]
        %v1255 = vld [vmem:[%s584 + $0x8] sm:$0xf]
        %v1256 = vld [vmem:[%s584 + $0xc] sm:$0xf]
        %v1257 = vld [vmem:[%s584 + $0x10] sm:$0xf]
        %v1258 = vld [vmem:[%s584 + $0x14] sm:$0xf]
        %v1259 = vld [vmem:[%s584 + $0x18] sm:$0xf]
        %v1260 = vld [vmem:[%s584 + $0x1c] sm:$0xf]
        %v1261 = vld [vmem:[%s584 + $0x20] sm:$0xf]
        %v1262 = vld [vmem:[%s584 + $0x24] sm:$0xf]
        %v1263 = vld [vmem:[%s584 + $0x28] sm:$0xf]
        %v1264 = vld [vmem:[%s584 + $0x2c] sm:$0xf]
        %v1265 = vld [vmem:[%s584 + $0x30] sm:$0xf]
        %v1266 = vld [vmem:[%s584 + $0x34] sm:$0xf]
        %v1267 = vld [vmem:[%s584 + $0x38] sm:$0xf]
        %v1268 = vld [vmem:[%s584 + $0x3c] sm:$0xf]
        %v1269 = vld [vmem:[%s693] sm:$0x1]
        %v1271 = vlaneseq
        %v1272 = vshrl.u32 %v1271, 7
        %v1273 = vsub.s32 0, %v1272
        %v1274 = vrot.slane %v1269, %v1273
        %v1292 = vunpack.c.l.b16 %v1253
        %v1293 = vunpack.c.l.b16 %v1254
        %v1294 = vunpack.c.l.b16 %v1255
        %v1295 = vunpack.c.l.b16 %v1256
        %v1296 = vunpack.c.l.b16 %v1257
        %v1297 = vunpack.c.l.b16 %v1258
        %v1298 = vunpack.c.l.b16 %v1259
        %v1299 = vunpack.c.l.b16 %v1260
        %v1300 = vunpack.c.l.b16 %v1261
        %v1301 = vunpack.c.l.b16 %v1262
        %v1302 = vunpack.c.l.b16 %v1263
        %v1303 = vunpack.c.l.b16 %v1264
        %v1304 = vunpack.c.l.b16 %v1265
        %v1305 = vunpack.c.l.b16 %v1266
        %v1306 = vunpack.c.l.b16 %v1267
        %v1307 = vunpack.c.l.b16 %v1268
        %v1308 = vpack.c.b16 %v1293, %v1292
        %v1309 = vpack.c.b16 %v1295, %v1294
        %v1310 = vpack.c.b16 %v1297, %v1296
        %v1311 = vpack.c.b16 %v1299, %v1298
        %v1312 = vpack.c.b16 %v1301, %v1300
        %v1313 = vpack.c.b16 %v1303, %v1302
        %v1314 = vpack.c.b16 %v1305, %v1304
        %v1315 = vpack.c.b16 %v1307, %v1306
        %1324 = vmatprep.subr.bf16.mxu0 0
        %1325 = vmatpush1.bf16.msra.mxu0 %v1308
        %1326 = vmatprep.subr.bf16.mxu0 0
        %1327 = vmatpush1.bf16.msra.mxu0 %v1309
        %1328 = vmatprep.subr.bf16.mxu0 0
        %1329 = vmatpush1.bf16.msra.mxu0 %v1310
        %1330 = vmatprep.subr.bf16.mxu0 0
        %1331 = vmatpush1.bf16.msra.mxu0 %v1311
        %1332 = vmatprep.subr.bf16.mxu0 0
        %1333 = vmatpush1.bf16.msra.mxu0 %v1312
        %1334 = vmatprep.subr.bf16.mxu0 0
        %1335 = vmatpush1.bf16.msra.mxu0 %v1313
        %1336 = vmatprep.subr.bf16.mxu0 0
        %1337 = vmatpush1.bf16.msra.mxu0 %v1314
        %1338 = vmatprep.subr.bf16.mxu0 0
        %1339 = vmatpush1.bf16.msra.mxu0 %v1315
        %1340 = vmatprep.subr.bf16.mxu0 0
        %1341 = vmatpush1.bf16.msra.mxu0 0
        %1342 = vmatprep.subr.bf16.mxu0 0
        %1343 = vmatpush1.bf16.msra.mxu0 0
        %1344 = vmatprep.subr.bf16.mxu0 0
        %1345 = vmatpush1.bf16.msra.mxu0 0
        %1346 = vmatprep.subr.bf16.mxu0 0
        %1347 = vmatpush1.bf16.msra.mxu0 0
        %1348 = vmatprep.subr.bf16.mxu0 0
        %1349 = vmatpush1.bf16.msra.mxu0 0
        %1350 = vmatprep.subr.bf16.mxu0 0
        %1351 = vmatpush1.bf16.msra.mxu0 0
        %1352 = vmatprep.subr.bf16.mxu0 0
        %1353 = vmatpush1.bf16.msra.mxu0 0
        %1354 = vmatprep.subr.bf16.mxu0 0
        %1355 = vmatpush1.bf16.msra.mxu0 0
        %1356 = vmatprep.mubr.bf16.mxu0 0
        %1357 = vmatmul.mubr.bf16.gmra.mrb[0].mxu0 %v1249
        %v1358 = vpop.f32.mrb[0].mxu0
        %v1359 = vadd.f32 %v1274, %v1358
        %v1360 = vpop.f32.mrb[0].mxu0
        %v1361 = vpop.f32.mrb[0].mxu0
        %v1362 = vadd.f32 %v1274, %v1361
        %v1363 = vpop.f32.mrb[0].mxu0
        %1364 = vmatprep.mubr.bf16.mxu0 0
        %1365 = vmatmul.mubr.bf16.gmra.mrb[0].mxu0 %v1250
        %v1366 = vpop.f32.mrb[0].mxu0
        %v1367 = vadd.f32 %v1274, %v1366
        %v1368 = vpop.f32.mrb[0].mxu0
        %v1369 = vpop.f32.mrb[0].mxu0
        %v1370 = vadd.f32 %v1274, %v1369
        %v1371 = vpop.f32.mrb[0].mxu0
        %1372 = vmatprep.mubr.bf16.mxu0 0
        %1373 = vmatmul.mubr.bf16.gmra.mrb[0].mxu0 %v1251
        %v1374 = vpop.f32.mrb[0].mxu0
        %v1375 = vadd.f32 %v1274, %v1374
        %v1376 = vpop.f32.mrb[0].mxu0
        %v1377 = vpop.f32.mrb[0].mxu0
        %v1378 = vadd.f32 %v1274, %v1377
        %v1379 = vpop.f32.mrb[0].mxu0
        %1380 = vmatprep.mubr.bf16.mxu0 0
        %1381 = vmatmul.mubr.bf16.gmra.mrb[0].mxu0 %v1252
        %v1382 = vpop.f32.mrb[0].mxu0
        %v1383 = vadd.f32 %v1274, %v1382
        %v1384 = vpop.f32.mrb[0].mxu0
        %v1385 = vpop.f32.mrb[0].mxu0
        %v1386 = vadd.f32 %v1274, %v1385
        %v1387 = vpop.f32.mrb[0].mxu0
        %1388 = vdwg.mxu0
        %v1389 = vmax.f32 %v1359, 0.0
        %v1390 = vmax.f32 %v1362, 0.0
        %v1391 = vmax.f32 %v1367, 0.0
        %v1392 = vmax.f32 %v1370, 0.0
        %v1393 = vmax.f32 %v1375, 0.0
        %v1394 = vmax.f32 %v1378, 0.0
        %v1395 = vmax.f32 %v1383, 0.0
        %v1396 = vmax.f32 %v1386, 0.0
        %v1397 = vpack.c.bf16 %v1390, %v1389
        %v1398 = vpack.c.bf16 %v1392, %v1391
        %v1399 = vpack.c.bf16 %v1394, %v1393
        %v1400 = vpack.c.bf16 %v1396, %v1395
        %v1401 = vld [vmem:[%s593] sm:$0xf]
        %v1402 = vld [vmem:[%s593 + $0x4] sm:$0xf]
        %v1403 = vld [vmem:[%s593 + $0x8] sm:$0xf]
        %v1404 = vld [vmem:[%s593 + $0xc] sm:$0xf]
        %v1405 = vld [vmem:[%s593 + $0x10] sm:$0xf]
        %v1406 = vld [vmem:[%s593 + $0x14] sm:$0xf]
        %v1407 = vld [vmem:[%s593 + $0x18] sm:$0xf]
        %v1408 = vld [vmem:[%s593 + $0x1c] sm:$0xf]
        %v1409 = vld [vmem:[%s593 + $0x20] sm:$0xf]
        %v1410 = vld [vmem:[%s593 + $0x24] sm:$0xf]
        %v1411 = vld [vmem:[%s593 + $0x28] sm:$0xf]
        %v1412 = vld [vmem:[%s593 + $0x2c] sm:$0xf]
        %v1413 = vld [vmem:[%s593 + $0x30] sm:$0xf]
        %v1414 = vld [vmem:[%s593 + $0x34] sm:$0xf]
        %v1415 = vld [vmem:[%s593 + $0x38] sm:$0xf]
        %v1416 = vld [vmem:[%s593 + $0x3c] sm:$0xf]
        %v1417 = vld [vmem:[%s696] sm:$0x1]
        %v1419 = vlaneseq
        %v1420 = vshrl.u32 %v1419, 7
        %v1421 = vsub.s32 0, %v1420
        %v1422 = vrot.slane %v1417, %v1421
        %v1440 = vunpack.c.l.b16 %v1401
        %v1441 = vunpack.c.l.b16 %v1402
        %v1442 = vunpack.c.l.b16 %v1403
        %v1443 = vunpack.c.l.b16 %v1404
        %v1444 = vunpack.c.l.b16 %v1405
        %v1445 = vunpack.c.l.b16 %v1406
        %v1446 = vunpack.c.l.b16 %v1407
        %v1447 = vunpack.c.l.b16 %v1408
        %v1448 = vunpack.c.l.b16 %v1409
        %v1449 = vunpack.c.l.b16 %v1410
        %v1450 = vunpack.c.l.b16 %v1411
        %v1451 = vunpack.c.l.b16 %v1412
        %v1452 = vunpack.c.l.b16 %v1413
        %v1453 = vunpack.c.l.b16 %v1414
        %v1454 = vunpack.c.l.b16 %v1415
        %v1455 = vunpack.c.l.b16 %v1416
        %v1456 = vpack.c.b16 %v1441, %v1440
        %v1457 = vpack.c.b16 %v1443, %v1442
        %v1458 = vpack.c.b16 %v1445, %v1444
        %v1459 = vpack.c.b16 %v1447, %v1446
        %v1460 = vpack.c.b16 %v1449, %v1448
        %v1461 = vpack.c.b16 %v1451, %v1450
        %v1462 = vpack.c.b16 %v1453, %v1452
        %v1463 = vpack.c.b16 %v1455, %v1454
        %1472 = vmatprep.subr.bf16.mxu0 0
        %1473 = vmatpush1.bf16.msra.mxu0 %v1456
        %1474 = vmatprep.subr.bf16.mxu0 0
        %1475 = vmatpush1.bf16.msra.mxu0 %v1457
        %1476 = vmatprep.subr.bf16.mxu0 0
        %1477 = vmatpush1.bf16.msra.mxu0 %v1458
        %1478 = vmatprep.subr.bf16.mxu0 0
        %1479 = vmatpush1.bf16.msra.mxu0 %v1459
        %1480 = vmatprep.subr.bf16.mxu0 0
        %1481 = vmatpush1.bf16.msra.mxu0 %v1460
        %1482 = vmatprep.subr.bf16.mxu0 0
        %1483 = vmatpush1.bf16.msra.mxu0 %v1461
        %1484 = vmatprep.subr.bf16.mxu0 0
        %1485 = vmatpush1.bf16.msra.mxu0 %v1462
        %1486 = vmatprep.subr.bf16.mxu0 0
        %1487 = vmatpush1.bf16.msra.mxu0 %v1463
        %1488 = vmatprep.subr.bf16.mxu0 0
        %1489 = vmatpush1.bf16.msra.mxu0 0
        %1490 = vmatprep.subr.bf16.mxu0 0
        %1491 = vmatpush1.bf16.msra.mxu0 0
        %1492 = vmatprep.subr.bf16.mxu0 0
        %1493 = vmatpush1.bf16.msra.mxu0 0
        %1494 = vmatprep.subr.bf16.mxu0 0
        %1495 = vmatpush1.bf16.msra.mxu0 0
        %1496 = vmatprep.subr.bf16.mxu0 0
        %1497 = vmatpush1.bf16.msra.mxu0 0
        %1498 = vmatprep.subr.bf16.mxu0 0
        %1499 = vmatpush1.bf16.msra.mxu0 0
        %1500 = vmatprep.subr.bf16.mxu0 0
        %1501 = vmatpush1.bf16.msra.mxu0 0
        %1502 = vmatprep.subr.bf16.mxu0 0
        %1503 = vmatpush1.bf16.msra.mxu0 0
        %1504 = vmatprep.mubr.bf16.mxu0 0
        %1505 = vmatmul.mubr.bf16.gmra.mrb[0].mxu0 %v1397
        %v1506 = vpop.f32.mrb[0].mxu0
        %v1507 = vadd.f32 %v1422, %v1506
        %v1508 = vpop.f32.mrb[0].mxu0
        %v1509 = vpop.f32.mrb[0].mxu0
        %v1510 = vadd.f32 %v1422, %v1509
        %v1511 = vpop.f32.mrb[0].mxu0
        %1512 = vmatprep.mubr.bf16.mxu0 0
        %1513 = vmatmul.mubr.bf16.gmra.mrb[0].mxu0 %v1398
        %v1514 = vpop.f32.mrb[0].mxu0
        %v1515 = vadd.f32 %v1422, %v1514
        %v1516 = vpop.f32.mrb[0].mxu0
        %v1517 = vpop.f32.mrb[0].mxu0
        %v1518 = vadd.f32 %v1422, %v1517
        %v1519 = vpop.f32.mrb[0].mxu0
        %1520 = vmatprep.mubr.bf16.mxu0 0
        %1521 = vmatmul.mubr.bf16.gmra.mrb[0].mxu0 %v1399
        %v1522 = vpop.f32.mrb[0].mxu0
        %v1523 = vadd.f32 %v1422, %v1522
        %v1524 = vpop.f32.mrb[0].mxu0
        %v1525 = vpop.f32.mrb[0].mxu0
        %v1526 = vadd.f32 %v1422, %v1525
        %v1527 = vpop.f32.mrb[0].mxu0
        %1528 = vmatprep.mubr.bf16.mxu0 0
        %1529 = vmatmul.mubr.bf16.gmra.mrb[0].mxu0 %v1400
        %v1530 = vpop.f32.mrb[0].mxu0
        %v1531 = vadd.f32 %v1422, %v1530
        %v1532 = vpop.f32.mrb[0].mxu0
        %v1533 = vpop.f32.mrb[0].mxu0
        %v1534 = vadd.f32 %v1422, %v1533
        %v1535 = vpop.f32.mrb[0].mxu0
        %1536 = vdwg.mxu0
        %v1537 = vadd.f32 %v1115, %v1507
        %v1538 = vadd.f32 %v1116, %v1510
        %v1539 = vadd.f32 %v1117, %v1515
        %v1540 = vadd.f32 %v1118, %v1518
        %v1541 = vadd.f32 %v1119, %v1523
        %v1542 = vadd.f32 %v1120, %v1526
        %v1543 = vadd.f32 %v1121, %v1531
        %v1544 = vadd.f32 %v1122, %v1534
        %1545 = vst [vmem:[%s674] sm:$0xff] %v1537
        %1546 = vst [vmem:[%s674 + $0x8] sm:$0xff] %v1538
        %1547 = vst [vmem:[%s674 + $0x10] sm:$0xff] %v1539
        %1548 = vst [vmem:[%s674 + $0x18] sm:$0xff] %v1540
        %1549 = vst [vmem:[%s674 + $0x20] sm:$0xff] %v1541
        %1550 = vst [vmem:[%s674 + $0x28] sm:$0xff] %v1542
        %1551 = vst [vmem:[%s674 + $0x30] sm:$0xff] %v1543
        %1552 = vst [vmem:[%s674 + $0x38] sm:$0xff] %v1544
        %s1553 = sand.u32 %s367, 1
        %s1554 = scalar_lea.sflag [#allocation4], %s1553
        %s1555 = sand.u32 %s367, 1
        %s1556 = smul.addr %s1555, 64
        %s1557 = scalar_lea.vmem [#allocation11], %s1556
        // Predicated region
        $region93: #{tpu_custom_call.1} parent=67 // pred_check
          %p1558 = pneg %p377
        $region94: #{tpu_custom_call.1} parent=67 // pred_check_branch
          %1560 = sbr.rel (%p1558) target = $region96
        $region95: #{tpu_custom_call.1} parent=67 // pred_region
          %s1561 = smul.u32 8, %s39
          %s1563 = ssub.s32 1024, 1024
          %1564 = vsyncadd %s1554, %s1563
          %s1565 = smul.addr %s1561, 128
          %s1566 = scalar_lea.hbm %s12, %s1565
          %s1567 = sshll.u32 %s1557, 4
          %s1568 = int_to_ptr.vmem [resolvable:$true] %s1567
          %1573 = dma.vmem_to_hbm [thread:$0]  %s1568, 1024, %s1566, %s1554, 128, 128, 8
        $region96: #{tpu_custom_call.1} parent=67 // pred_fallthru
          _
      $region68: #{tpu_custom_call.1} parent=5 // pred_fallthru
        _
      %p1574 = scmp.le.s32.totalorder 2, %s30
      // Predicated region
      $region97: #{tpu_custom_call.1} parent=5 // pred_check
        %p1575 = pneg %p1574
      $region98: #{tpu_custom_call.1} parent=5 // pred_check_branch
        %1577 = sbr.rel (%p1575) target = $region100
      $region99: #{tpu_custom_call.1} parent=5 // pred_region
        %s1578 = ssub.s32 %s30, 2
        // Predicated region
        $region101: #{tpu_custom_call.1} parent=99 // pred_check
          %p1579 = pneg %p383
        $region102: #{tpu_custom_call.1} parent=99 // pred_check_branch
          %1581 = sbr.rel (%p1579) target = $region104
        $region103: #{tpu_custom_call.1} parent=99 // pred_region
          %s1582 = sand.u32 %s368, 1
          %s1583 = scalar_lea.sflag [#allocation4], %s1582
          %s1584 = sand.u32 %s368, 1
          %s1585 = smul.addr %s1584, 64
          %s1586 = scalar_lea.vmem [#allocation11], %s1585
          %1587 = dma.done %s1583, 1024
        $region104: #{tpu_custom_call.1} parent=99 // pred_fallthru
          _
      $region100: #{tpu_custom_call.1} parent=5 // pred_fallthru
        _
    $region6: #{tpu_custom_call.1} parent=1 // loop_footer
      %s34 = sadd.s32 1, %s30
    $region7: #{tpu_custom_call.1} parent=1 // loop_footer_branch
      %29 = sbr.rel target = $region3
    $region8: #{tpu_custom_call.1} parent=1 // loop_exit
      _
    %1588 = vsyncpa [#allocation3], 1
    %s1589 = scalar_lea.sflag [#allocation3], 1
    %1590 = vsyncpa %s1589, 1
    %1591 = vsyncpa [#allocation6], 1
    %s1592 = scalar_lea.sflag [#allocation6], 1
    %1593 = vsyncpa %s1592, 1
    %1594 = vsyncpa [#allocation9], 1
    %s1595 = scalar_lea.sflag [#allocation9], 1
    %1596 = vsyncpa %s1595, 1
    %1597 = vsyncpa [#allocation4], 1
    %s1598 = scalar_lea.sflag [#allocation4], 1
    %1599 = vsyncpa %s1598, 1

</llo_original>
